<compile_context>
chip_gen: v5e
topology: v5e:2x2
jax: 0.10.0
libtpu: 0.0.40
codegen_flags: <defaults>
</compile_context>

<pallas_src>
import jax
import jax.numpy as jnp
from jax.experimental import pallas as pl
from jax.experimental.pallas import tpu as pltpu


# Tile sizes (all footprints stay far below even v7x's 64 MiB VMEM).
_TM_LIN = 2048    # row tile for the plain linear(+relu) kernel
_TM_SEG = 1024    # node-row tile for the fused scatter-mean + node update
_TE = 512         # edge/node tile for the segment reductions (mult. of 256)


def _round_up(x, m):
    return ((x + m - 1) // m) * m


def _row_tile(m, cap):
    """Row tile: as big as `cap` allows, but >= 2 tiles whenever m allows so
    the 'parallel' grid axis keeps v7x's second TensorCore busy."""
    t = min(cap, _round_up(-(-m // 2), 8))
    return max(8, min(t, m))


def _seg_tile(extent):
    """Reduction-axis tile (multiple of 128) and the padded extent it divides."""
    t = min(_TE, _round_up(extent, 128))
    return t, _round_up(extent, t)


# ----------------------------------------------------------------------------
# Kernel 1: y = relu(x @ W + b), row-tiled, weights VMEM-resident.
# ----------------------------------------------------------------------------
def linear_relu(x2d, w, b, *, cap=_TM_LIN):
    m, kin = x2d.shape
    n = w.shape[1]
    tm = _row_tile(m, cap)
    b2 = b.reshape(1, n).astype(jnp.float32)

    def kernel(x_ref, w_ref, b_ref, o_ref):
        o_ref[...] = jnp.maximum(
            jnp.dot(x_ref[...], w_ref[...],
                    preferred_element_type=jnp.float32) + b_ref[...], 0.0)

    cost = pl.CostEstimate(
        flops=2 * m * kin * n, transcendentals=0,
        bytes_accessed=4 * (m * kin + kin * n + n + m * n))

    return pl.pallas_call(
        kernel,
        out_shape=jax.ShapeDtypeStruct((m, n), jnp.float32),
        grid=(pl.cdiv(m, tm),),
        in_specs=[pl.BlockSpec((tm, kin), lambda i: (i, 0)),
                  pl.BlockSpec((kin, n), lambda i: (0, 0)),
                  pl.BlockSpec((1, n), lambda i: (0, 0))],
        out_specs=pl.BlockSpec((tm, n), lambda i: (i, 0)),
        compiler_params=pltpu.CompilerParams(
            dimension_semantics=("parallel",)),
        cost_estimate=cost,
    )(x2d, w, b2)


# ----------------------------------------------------------------------------
# Kernel 2: node update with the scatter-mean fused in.
#   x_out = relu(segment_mean(edge_out, dst, N) @ W_m + [x|u_node] @ W_xu + b)
# Grid = (node row tiles [parallel], edge tiles [arbitrary/reduction]).
# Per edge tile: one one-hot matmul accumulates segment sums; counts are a
# lane reduce of the same one-hot (no second matmul).  The padded edge tail
# carries dst == -1, so no per-tile validity mask is needed.
# ----------------------------------------------------------------------------
def fused_node_update(xu, edge_out, dst_pad, w_m, w_xu, b, *, te):
    n_pad, kxu = xu.shape
    e_pad, d_e = edge_out.shape
    n_out = w_m.shape[1]
    b2 = b.reshape(1, n_out).astype(jnp.float32)

    tm = _row_tile(n_pad, _TM_SEG)
    n_tiles = (n_pad + tm - 1) // tm
    k_tiles = e_pad // te

    def kernel(dst_ref, eo_ref, xu_ref, wm_ref, wxu_ref, b_ref, o_ref,
               acc_ref, cnt_ref):
        i = pl.program_id(0)
        k = pl.program_id(1)

        @pl.when(k == 0)
        def _():
            acc_ref[...] = jnp.zeros_like(acc_ref)
            cnt_ref[...] = jnp.zeros_like(cnt_ref)

        # One-hot scatter matrix for this (node tile, edge tile) pair.  Shift
        # the (1, te) segment ids instead of the whole (tm, te) iota.
        seg = dst_ref[...] - i * tm                                   # (1, te)
        rows = jax.lax.broadcasted_iota(jnp.int32, (tm, te), 0)
        onehot = (rows == seg).astype(jnp.float32)                    # (tm, te)
        acc_ref[...] += jnp.dot(onehot, eo_ref[...],
                                preferred_element_type=jnp.float32)
        cnt_ref[...] += jnp.sum(onehot, axis=1, keepdims=True)

        @pl.when(k == k_tiles - 1)
        def _():
            msg = acc_ref[...] / jnp.maximum(cnt_ref[...], 1.0)
            out = (jnp.dot(msg, wm_ref[...],
                           preferred_element_type=jnp.float32)
                   + jnp.dot(xu_ref[...], wxu_ref[...],
                             preferred_element_type=jnp.float32)
                   + b_ref[...])
            o_ref[...] = jnp.maximum(out, 0.0)

    cost = pl.CostEstimate(
        flops=2 * n_pad * e_pad * d_e + 2 * n_pad * (d_e + kxu) * n_out,
        transcendentals=0,
        bytes_accessed=4 * (n_tiles * e_pad * (d_e + 1)
                            + n_pad * (kxu + n_out)
                            + (d_e + kxu + 1) * n_out))

    return pl.pallas_call(
        kernel,
        out_shape=jax.ShapeDtypeStruct((n_pad, n_out), jnp.float32),
        grid=(n_tiles, k_tiles),
        in_specs=[
            pl.BlockSpec((1, te), lambda i, k: (0, k)),       # dst (sentinel pad)
            pl.BlockSpec((te, d_e), lambda i, k: (k, 0)),     # edge_out tile
            pl.BlockSpec((tm, kxu), lambda i, k: (i, 0)),     # [x | u[batch]]
            pl.BlockSpec((d_e, n_out), lambda i, k: (0, 0)),  # W_msg (resident)
            pl.BlockSpec((kxu, n_out), lambda i, k: (0, 0)),  # W_[x|u]
            pl.BlockSpec((1, n_out), lambda i, k: (0, 0)),    # bias
        ],
        out_specs=pl.BlockSpec((tm, n_out), lambda i, k: (i, 0)),
        scratch_shapes=[pltpu.VMEM((tm, d_e), jnp.float32),
                        pltpu.VMEM((tm, 1), jnp.float32)],
        compiler_params=pltpu.CompilerParams(
            dimension_semantics=("parallel", "arbitrary")),
        cost_estimate=cost,
    )(dst_pad, edge_out, xu, w_m, w_xu, b2)


# ----------------------------------------------------------------------------
# Kernel 3: whole global stage in one call.
#   u_out = relu(segment_mean(edge_out, batch_src) @ W_ge
#                + segment_mean(x_out, batch)     @ W_gx
#                + u @ W_gu + b)
# A single 1-D reduction grid walks edge tiles and node tiles in lock-step;
# pl.when guards skip whichever stream runs out first.
# ----------------------------------------------------------------------------
def fused_global_update(edge_out, bsrc_pad, x_out, batch_pad, u,
                        w_ge, w_gx, w_gu, b, *, te_e, te_n):
    e_pad, d_e = edge_out.shape
    n_pad, d_n = x_out.shape
    g, f_g = u.shape
    n_out = w_ge.shape[1]
    b2 = b.reshape(1, n_out).astype(jnp.float32)

    ke = e_pad // te_e
    kn = n_pad // te_n
    k_tot = max(ke, kn)

    def kernel(bsrc_ref, eo_ref, bn_ref, xo_ref, u_ref,
               wge_ref, wgx_ref, wgu_ref, b_ref, o_ref,
               eg_sum, eg_cnt, xg_sum, xg_cnt):
        k = pl.program_id(0)

        @pl.when(k == 0)
        def _():
            eg_sum[...] = jnp.zeros_like(eg_sum)
            eg_cnt[...] = jnp.zeros_like(eg_cnt)
            xg_sum[...] = jnp.zeros_like(xg_sum)
            xg_cnt[...] = jnp.zeros_like(xg_cnt)

        @pl.when(k < ke)
        def _():
            seg = bsrc_ref[...]                                       # (1, te_e)
            rows = jax.lax.broadcasted_iota(jnp.int32, (g, te_e), 0)
            onehot = (rows == seg).astype(jnp.float32)
            eg_sum[...] += jnp.dot(onehot, eo_ref[...],
                                   preferred_element_type=jnp.float32)
            eg_cnt[...] += jnp.sum(onehot, axis=1, keepdims=True)

        @pl.when(k < kn)
        def _():
            seg = bn_ref[...]                                         # (1, te_n)
            rows = jax.lax.broadcasted_iota(jnp.int32, (g, te_n), 0)
            onehot = (rows == seg).astype(jnp.float32)
            xg_sum[...] += jnp.dot(onehot, xo_ref[...],
                                   preferred_element_type=jnp.float32)
            xg_cnt[...] += jnp.sum(onehot, axis=1, keepdims=True)

        @pl.when(k == k_tot - 1)
        def _():
            eg = eg_sum[...] / jnp.maximum(eg_cnt[...], 1.0)
            xg = xg_sum[...] / jnp.maximum(xg_cnt[...], 1.0)
            out = (jnp.dot(eg, wge_ref[...], preferred_element_type=jnp.float32)
                   + jnp.dot(xg, wgx_ref[...], preferred_element_type=jnp.float32)
                   + jnp.dot(u_ref[...], wgu_ref[...],
                             preferred_element_type=jnp.float32)
                   + b_ref[...])
            o_ref[...] = jnp.maximum(out, 0.0)

    cost = pl.CostEstimate(
        flops=2 * g * (e_pad * d_e + n_pad * d_n + (d_e + d_n + f_g) * n_out),
        transcendentals=0,
        bytes_accessed=4 * (e_pad * (d_e + 1) + n_pad * (d_n + 1)
                            + g * (f_g + n_out)
                            + (d_e + d_n + f_g + 1) * n_out))

    return pl.pallas_call(
        kernel,
        out_shape=jax.ShapeDtypeStruct((g, n_out), jnp.float32),
        grid=(k_tot,),
        in_specs=[
            pl.BlockSpec((1, te_e), lambda k: (0, jnp.minimum(k, ke - 1))),
            pl.BlockSpec((te_e, d_e), lambda k: (jnp.minimum(k, ke - 1), 0)),
            pl.BlockSpec((1, te_n), lambda k: (0, jnp.minimum(k, kn - 1))),
            pl.BlockSpec((te_n, d_n), lambda k: (jnp.minimum(k, kn - 1), 0)),
            pl.BlockSpec((g, f_g), lambda k: (0, 0)),
            pl.BlockSpec((d_e, n_out), lambda k: (0, 0)),
            pl.BlockSpec((d_n, n_out), lambda k: (0, 0)),
            pl.BlockSpec((f_g, n_out), lambda k: (0, 0)),
            pl.BlockSpec((1, n_out), lambda k: (0, 0)),
        ],
        out_specs=pl.BlockSpec((g, n_out), lambda k: (0, 0)),
        scratch_shapes=[pltpu.VMEM((g, d_e), jnp.float32),
                        pltpu.VMEM((g, 1), jnp.float32),
                        pltpu.VMEM((g, d_n), jnp.float32),
                        pltpu.VMEM((g, 1), jnp.float32)],
        compiler_params=pltpu.CompilerParams(
            dimension_semantics=("arbitrary",)),
        cost_estimate=cost,
    )(bsrc_pad, edge_out, batch_pad, x_out, u, w_ge, w_gx, w_gu, b2)


# ----------------------------------------------------------------------------
# MessagePassing forward
# ----------------------------------------------------------------------------
@jax.jit
def message_passing(x, edge_attr, edge_index, u, batch, params):
    (w_e, b_e), (w_n, b_n), (w_g, b_g) = params

    n_nodes, f_n = x.shape
    n_edges, _ = edge_attr.shape
    _, f_g = u.shape
    d_e = w_e.shape[1]
    d_n = w_n.shape[1]

    src = edge_index[0].astype(jnp.int32)
    dst = edge_index[1].astype(jnp.int32)
    batch = batch.astype(jnp.int32)
    bsrc = batch[src]

    te_e, e_pad = _seg_tile(n_edges)
    te_n, n_pad = _seg_tile(n_nodes)

    # --- edge update: relu([x_src | edge_attr | u_src] @ W_e + b_e) --------
    # The gathers + concat fuse into one XLA producer of the (E, ktot) matmul
    # input, so the kernel does ONE full-K dot (vs. 3 small-K dots).
    e_in = jnp.concatenate([x[src], edge_attr, u[bsrc]], axis=1)
    e_in = jnp.pad(e_in, ((0, e_pad - n_edges), (0, 0)))
    edge_out_full = linear_relu(e_in, w_e, b_e)                 # (E_pad, d_e)

    # Sentinel-padded segment ids (padded tail never matches any segment row).
    dst_pad = jnp.pad(dst, (0, e_pad - n_edges),
                      constant_values=-1).reshape(1, e_pad)
    bsrc_pad = jnp.pad(bsrc, (0, e_pad - n_edges),
                       constant_values=-1).reshape(1, e_pad)
    batch_pad = jnp.pad(batch, (0, n_pad - n_nodes),
                        constant_values=-1).reshape(1, n_pad)

    # --- node update: scatter-mean fused into the node-update matmul -------
    w_nx = w_n[:f_n]
    w_nm = w_n[f_n:f_n + d_e]
    w_nu = w_n[f_n + d_e:]
    w_xu = jnp.concatenate([w_nx, w_nu], axis=0)        # rows for [x | u[batch]]
    xu = jnp.concatenate([x, u[batch]], axis=1)
    xu = jnp.pad(xu, ((0, n_pad - n_nodes), (0, 0)))
    x_out_full = fused_node_update(xu, edge_out_full, dst_pad,
                                   w_nm, w_xu, b_n, te=te_e)    # (N_pad, d_n)

    # --- global update: both scatter-means + global linear, one call -------
    w_ge = w_g[:d_e]
    w_gx = w_g[d_e:d_e + d_n]
    w_gu = w_g[d_e + d_n:]
    u_out = fused_global_update(edge_out_full, bsrc_pad, x_out_full, batch_pad,
                                u, w_ge, w_gx, w_gu, b_g,
                                te_e=te_e, te_n=te_n)

    return (x_out_full[:n_nodes], edge_out_full[:n_edges], edge_index,
            u_out, batch)


# ----------------------------------------------------------------------------
# Pure-JAX reference (correctness sanity check)
# ----------------------------------------------------------------------------
def _segment_mean_ref(src, idx, dim_size):
    sums = jax.ops.segment_sum(src, idx, num_segments=dim_size)
    cnts = jax.ops.segment_sum(jnp.ones((src.shape[0],), jnp.float32), idx,
                               num_segments=dim_size)
    return sums / jnp.maximum(cnts, 1.0)[:, None]


def message_passing_ref(x, edge_attr, edge_index, u, batch, params):
    (w_e, b_e), (w_n, b_n), (w_g, b_g) = params
    src, dst = edge_index[0], edge_index[1]
    x_src, batch_src = x[src], batch[src]
    e_in = jnp.concatenate([x_src, edge_attr, u[batch_src]], axis=1)
    edge_out = jax.nn.relu(e_in @ w_e + b_e)
    msg_to_node = _segment_mean_ref(edge_out, dst, x.shape[0])
    n_in = jnp.concatenate([x, msg_to_node, u[batch]], axis=1)
    x_out = jax.nn.relu(n_in @ w_n + b_n)
    edge_global = _segment_mean_ref(edge_out, batch_src, u.shape[0])
    x_global = _segment_mean_ref(x_out, batch, u.shape[0])
    g_in = jnp.concatenate([edge_global, x_global, u], axis=1)
    u_out = jax.nn.relu(g_in @ w_g + b_g)
    return x_out, edge_out, u_out


# ----------------------------------------------------------------------------
# Deterministic parameter init (PyTorch-Linear-style uniform)
# ----------------------------------------------------------------------------
def init_linear(key, fan_in, fan_out):
    kw, kb = jax.random.split(key)
    bound = 1.0 / jnp.sqrt(fan_in)
    w = jax.random.uniform(kw, (fan_in, fan_out), jnp.float32, -bound, bound)
    b = jax.random.uniform(kb, (fan_out,), jnp.float32, -bound, bound)
    return w, b


if __name__ == "__main__":
    # module config (batch_norm=False, dropout=0.0)
    in_node_feats, in_edge_feats, in_global_feats = 8, 8, 8
    out_node_feats, out_edge_feats, out_global_feats = 16, 16, 16

    # small graph: 16 nodes, 32 edges, 2 graphs
    N, E, G = 16, 32, 2

    key = jax.random.PRNGKey(0)
    k1, k2, k3, k4, k5, k6, k7, k8 = jax.random.split(key, 8)

    x = jax.random.normal(k1, (N, in_node_feats), jnp.float32)
    edge_attr = jax.random.normal(k2, (E, in_edge_feats), jnp.float32)
    u = jax.random.normal(k3, (G, in_global_feats), jnp.float32)
    edge_index = jax.random.randint(k4, (2, E), 0, N, jnp.int32)
    batch = jnp.repeat(jnp.arange(G, dtype=jnp.int32), N // G)   # (N,)

    params = (
        init_linear(k5, in_node_feats + in_edge_feats + in_global_feats,
                    out_edge_feats),
        init_linear(k6, in_node_feats + out_edge_feats + in_global_feats,
                    out_node_feats),
        init_linear(k7, out_node_feats + out_edge_feats + in_global_feats,
                    out_global_feats),
    )

    x_out, e_out, ei_out, u_out, b_out = jax.block_until_ready(
        message_passing(x, edge_attr, edge_index, u, batch, params))

    # sanity check vs. pure-JAX reference
    x_ref, e_ref, u_ref = message_passing_ref(x, edge_attr, edge_index, u,
                                              batch, params)
    assert jnp.allclose(x_out, x_ref, atol=1e-4, rtol=1e-4)
    assert jnp.allclose(e_out, e_ref, atol=1e-4, rtol=1e-4)
    assert jnp.allclose(u_out, u_ref, atol=1e-4, rtol=1e-4)

    print("KERNEL_OK")
</pallas_src>

<mosaic_0001>
module attributes {stable_mosaic.version = 11 : i64} {
  func.func @kernel(%arg0: i32, %arg1: memref<64x24xf32, #tpu.memory_space<vmem>>, %arg2: memref<24x16xf32, #tpu.memory_space<vmem>>, %arg3: memref<1x16xf32, #tpu.memory_space<vmem>>, %arg4: memref<64x16xf32, #tpu.memory_space<vmem>>) attributes {dimension_semantics = [#tpu.dimension_semantics<parallel>], iteration_bounds = array<i64: 2>, scalar_prefetch = 0 : i64, scratch_operands = 0 : i64, tpu.core_type = #tpu.core_type<tc>, window_params = [{transform_indices = @transform_0, window_bounds = array<i64: 64, 24>}, {pipeline_mode = #tpu.pipeline_mode<synchronous>, transform_indices = @transform_1, window_bounds = array<i64: 24, 16>}, {pipeline_mode = #tpu.pipeline_mode<synchronous>, transform_indices = @transform_2, window_bounds = array<i64: 1, 16>}, {transform_indices = @transform_3, window_bounds = array<i64: 64, 16>}]} {
    %c0 = arith.constant 0 : index
    %c0_0 = arith.constant 0 : index
    %0 = vector.load %arg1[%c0, %c0_0] : memref<64x24xf32, #tpu.memory_space<vmem>>, vector<64x24xf32>
    %c0_1 = arith.constant 0 : index
    %c0_2 = arith.constant 0 : index
    %1 = vector.load %arg2[%c0_1, %c0_2] : memref<24x16xf32, #tpu.memory_space<vmem>>, vector<24x16xf32>
    %cst = arith.constant dense<0.000000e+00> : vector<64x16xf32>
    %2 = tpu.matmul %0, %1, %cst {dimension_numbers = #tpu.dot_dimension_numbers<[1], [0], [0], [1], [0, 0, 1, 1], [], []>} : vector<64x24xf32>, vector<24x16xf32>, vector<64x16xf32> -> vector<64x16xf32>
    %c0_3 = arith.constant 0 : index
    %c0_4 = arith.constant 0 : index
    %3 = vector.load %arg3[%c0_3, %c0_4] : memref<1x16xf32, #tpu.memory_space<vmem>>, vector<1x16xf32>
    %4 = vector.broadcast %3 : vector<1x16xf32> to vector<64x16xf32>
    %5 = arith.addf %2, %4 : vector<64x16xf32>
    %cst_5 = arith.constant 0.000000e+00 : f32
    %6 = vector.broadcast %cst_5 : f32 to vector<64x16xf32>
    %7 = arith.maximumf %5, %6 : vector<64x16xf32>
    %c0_6 = arith.constant 0 : index
    %c0_7 = arith.constant 0 : index
    %8 = vector.load %arg4[%c0_6, %c0_7] : memref<64x16xf32, #tpu.memory_space<vmem>>, vector<64x16xf32>
    tpu.vector_store %arg4[%c0_6, %c0_7], %7 {strides = array<i32>} : memref<64x16xf32, #tpu.memory_space<vmem>>, vector<64x16xf32>,
    return
  }
  func.func @transform_0(%arg0: i32) -> (i32, i32) {
    %c0_i32 = arith.constant 0 : i32
    %c0_i32_0 = arith.constant 0 : i32
    return %arg0, %c0_i32 : i32, i32
  }
  func.func @transform_1(%arg0: i32) -> (i32, i32) {
    %c0_i32 = arith.constant 0 : i32
    %c0_i32_0 = arith.constant 0 : i32
    %c0_i32_1 = arith.constant 0 : i32
    return %c0_i32, %c0_i32_0 : i32, i32
  }
  func.func @transform_2(%arg0: i32) -> (i32, i32) {
    %c0_i32 = arith.constant 0 : i32
    %c0_i32_0 = arith.constant 0 : i32
    %c0_i32_1 = arith.constant 0 : i32
    return %c0_i32, %c0_i32_0 : i32, i32
  }
  func.func @transform_3(%arg0: i32) -> (i32, i32) {
    %c0_i32 = arith.constant 0 : i32
    %c0_i32_0 = arith.constant 0 : i32
    return %arg0, %c0_i32 : i32, i32
  }
}

module attributes {stable_mosaic.version = 11 : i64} {
  func.func @kernel(%arg0: i32, %arg1: i32, %arg2: memref<1x128xi32, #tpu.memory_space<vmem>>, %arg3: memref<128x16xf32, #tpu.memory_space<vmem>>, %arg4: memref<64x16xf32, #tpu.memory_space<vmem>>, %arg5: memref<16x16xf32, #tpu.memory_space<vmem>>, %arg6: memref<16x16xf32, #tpu.memory_space<vmem>>, %arg7: memref<1x16xf32, #tpu.memory_space<vmem>>, %arg8: memref<64x16xf32, #tpu.memory_space<vmem>>, %arg9: memref<64x16xf32, #tpu.memory_space<vmem>>, %arg10: memref<64x1xf32, #tpu.memory_space<vmem>>) attributes {dimension_semantics = [#tpu.dimension_semantics<parallel>, #tpu.dimension_semantics<arbitrary>], iteration_bounds = array<i64: 2, 1>, scalar_prefetch = 0 : i64, scratch_operands = 2 : i64, tpu.core_type = #tpu.core_type<tc>, window_params = [{transform_indices = @transform_0, window_bounds = array<i64: 1, 128>}, {transform_indices = @transform_1, window_bounds = array<i64: 128, 16>}, {transform_indices = @transform_2, window_bounds = array<i64: 64, 16>}, {pipeline_mode = #tpu.pipeline_mode<synchronous>, transform_indices = @transform_3, window_bounds = array<i64: 16, 16>}, {pipeline_mode = #tpu.pipeline_mode<synchronous>, transform_indices = @transform_4, window_bounds = array<i64: 16, 16>}, {pipeline_mode = #tpu.pipeline_mode<synchronous>, transform_indices = @transform_5, window_bounds = array<i64: 1, 16>}, {transform_indices = @transform_6, window_bounds = array<i64: 64, 16>}]} {
    %c0_i32 = arith.constant 0 : i32
    %0 = arith.cmpi eq, %arg1, %c0_i32 : i32
    %1 = arith.extui %0 : i1 to i32
    %c0_i32_0 = arith.constant 0 : i32
    %2 = arith.cmpi ne, %1, %c0_i32_0 : i32
    scf.if %2 {
      %cst_15 = arith.constant 0.000000e+00 : f32
      %25 = vector.broadcast %cst_15 : f32 to vector<64x16xf32>
      %c0_16 = arith.constant 0 : index
      %c0_17 = arith.constant 0 : index
      %26 = vector.load %arg9[%c0_16, %c0_17] : memref<64x16xf32, #tpu.memory_space<vmem>>, vector<64x16xf32>
      tpu.vector_store %arg9[%c0_16, %c0_17], %25 {strides = array<i32>} : memref<64x16xf32, #tpu.memory_space<vmem>>, vector<64x16xf32>,
      %cst_18 = arith.constant 0.000000e+00 : f32
      %27 = vector.broadcast %cst_18 : f32 to vector<64x1xf32>
      %c0_19 = arith.constant 0 : index
      %c0_20 = arith.constant 0 : index
      %28 = vector.load %arg10[%c0_19, %c0_20] : memref<64x1xf32, #tpu.memory_space<vmem>>, vector<64x1xf32>
      tpu.vector_store %arg10[%c0_19, %c0_20], %27 {strides = array<i32>} : memref<64x1xf32, #tpu.memory_space<vmem>>, vector<64x1xf32>,
    } else {
    }
    %c0 = arith.constant 0 : index
    %c0_1 = arith.constant 0 : index
    %3 = vector.load %arg2[%c0, %c0_1] : memref<1x128xi32, #tpu.memory_space<vmem>>, vector<1x128xi32>
    %c64_i32 = arith.constant 64 : i32
    %4 = arith.muli %arg0, %c64_i32 : i32
    %5 = vector.broadcast %4 : i32 to vector<1x128xi32>
    %6 = arith.subi %3, %5 : vector<1x128xi32>
    %7 = tpu.iota {dimensions = array<i32: 0>} : vector<64x128xi32>
    %8 = vector.broadcast %6 : vector<1x128xi32> to vector<64x128xi32>
    %9 = arith.cmpi eq, %7, %8 : vector<64x128xi32>
    %10 = arith.extui %9 : vector<64x128xi1> to vector<64x128xi32>
    %11 = arith.sitofp %10 : vector<64x128xi32> to vector<64x128xf32>
    %c0_2 = arith.constant 0 : index
    %c0_3 = arith.constant 0 : index
    %12 = vector.load %arg9[%c0_2, %c0_3] : memref<64x16xf32, #tpu.memory_space<vmem>>, vector<64x16xf32>
    %c0_4 = arith.constant 0 : index
    %c0_5 = arith.constant 0 : index
    %13 = vector.load %arg3[%c0_4, %c0_5] : memref<128x16xf32, #tpu.memory_space<vmem>>, vector<128x16xf32>
    %cst = arith.constant dense<0.000000e+00> : vector<64x16xf32>
    %14 = tpu.matmul %11, %13, %cst {dimension_numbers = #tpu.dot_dimension_numbers<[1], [0], [0], [1], [0, 0, 1, 1], [], []>} : vector<64x128xf32>, vector<128x16xf32>, vector<64x16xf32> -> vector<64x16xf32>
    %15 = arith.addf %12, %14 : vector<64x16xf32>
    %c0_6 = arith.constant 0 : index
    %c0_7 = arith.constant 0 : index
    %16 = vector.load %arg9[%c0_6, %c0_7] : memref<64x16xf32, #tpu.memory_space<vmem>>, vector<64x16xf32>
    tpu.vector_store %arg9[%c0_6, %c0_7], %15 {strides = array<i32>} : memref<64x16xf32, #tpu.memory_space<vmem>>, vector<64x16xf32>,
    %c0_8 = arith.constant 0 : index
    %c0_9 = arith.constant 0 : index
    %17 = vector.load %arg10[%c0_8, %c0_9] : memref<64x1xf32, #tpu.memory_space<vmem>>, vector<64x1xf32>
    %cst_10 = arith.constant dense<0.000000e+00> : vector<64xf32>
    %18 = vector.multi_reduction <add>, %11, %cst_10 [1] : vector<64x128xf32> to vector<64xf32>
    %19 = vector.shape_cast %18 : vector<64xf32> to vector<64x1xf32>
    %20 = arith.addf %17, %19 : vector<64x1xf32>
    %c0_11 = arith.constant 0 : index
    %c0_12 = arith.constant 0 : index
    %21 = vector.load %arg10[%c0_11, %c0_12] : memref<64x1xf32, #tpu.memory_space<vmem>>, vector<64x1xf32>
    tpu.vector_store %arg10[%c0_11, %c0_12], %20 {strides = array<i32>} : memref<64x1xf32, #tpu.memory_space<vmem>>, vector<64x1xf32>,
    %c0_i32_13 = arith.constant 0 : i32
    %22 = arith.cmpi eq, %arg1, %c0_i32_13 : i32
    %23 = arith.extui %22 : i1 to i32
    %c0_i32_14 = arith.constant 0 : i32
    %24 = arith.cmpi ne, %23, %c0_i32_14 : i32
    scf.if %24 {
      %c0_15 = arith.constant 0 : index
      %c0_16 = arith.constant 0 : index
      %25 = vector.load %arg9[%c0_15, %c0_16] : memref<64x16xf32, #tpu.memory_space<vmem>>, vector<64x16xf32>
      %c0_17 = arith.constant 0 : index
      %c0_18 = arith.constant 0 : index
      %26 = vector.load %arg10[%c0_17, %c0_18] : memref<64x1xf32, #tpu.memory_space<vmem>>, vector<64x1xf32>
      %cst_19 = arith.constant 1.000000e+00 : f32
      %27 = vector.broadcast %cst_19 : f32 to vector<64x1xf32>
      %28 = arith.maximumf %26, %27 : vector<64x1xf32>
      %29 = vector.broadcast %28 : vector<64x1xf32> to vector<64x16xf32>
      %30 = arith.divf %25, %29 : vector<64x16xf32>
      %c0_20 = arith.constant 0 : index
      %c0_21 = arith.constant 0 : index
      %31 = vector.load %arg5[%c0_20, %c0_21] : memref<16x16xf32, #tpu.memory_space<vmem>>, vector<16x16xf32>
      %cst_22 = arith.constant dense<0.000000e+00> : vector<64x16xf32>
      %32 = tpu.matmul %30, %31, %cst_22 {dimension_numbers = #tpu.dot_dimension_numbers<[1], [0], [0], [1], [0, 0, 1, 1], [], []>} : vector<64x16xf32>, vector<16x16xf32>, vector<64x16xf32> -> vector<64x16xf32>
      %c0_23 = arith.constant 0 : index
      %c0_24 = arith.constant 0 : index
      %33 = vector.load %arg4[%c0_23, %c0_24] : memref<64x16xf32, #tpu.memory_space<vmem>>, vector<64x16xf32>
      %c0_25 = arith.constant 0 : index
      %c0_26 = arith.constant 0 : index
      %34 = vector.load %arg6[%c0_25, %c0_26] : memref<16x16xf32, #tpu.memory_space<vmem>>, vector<16x16xf32>
      %cst_27 = arith.constant dense<0.000000e+00> : vector<64x16xf32>
      %35 = tpu.matmul %33, %34, %cst_27 {dimension_numbers = #tpu.dot_dimension_numbers<[1], [0], [0], [1], [0, 0, 1, 1], [], []>} : vector<64x16xf32>, vector<16x16xf32>, vector<64x16xf32> -> vector<64x16xf32>
      %36 = arith.addf %32, %35 : vector<64x16xf32>
      %c0_28 = arith.constant 0 : index
      %c0_29 = arith.constant 0 : index
      %37 = vector.load %arg7[%c0_28, %c0_29] : memref<1x16xf32, #tpu.memory_space<vmem>>, vector<1x16xf32>
      %38 = vector.broadcast %37 : vector<1x16xf32> to vector<64x16xf32>
      %39 = arith.addf %36, %38 : vector<64x16xf32>
      %cst_30 = arith.constant 0.000000e+00 : f32
      %40 = vector.broadcast %cst_30 : f32 to vector<64x16xf32>
      %41 = arith.maximumf %39, %40 : vector<64x16xf32>
      %c0_31 = arith.constant 0 : index
      %c0_32 = arith.constant 0 : index
      %42 = vector.load %arg8[%c0_31, %c0_32] : memref<64x16xf32, #tpu.memory_space<vmem>>, vector<64x16xf32>
      tpu.vector_store %arg8[%c0_31, %c0_32], %41 {strides = array<i32>} : memref<64x16xf32, #tpu.memory_space<vmem>>, vector<64x16xf32>,
    } else {
    }
    return
  }
  func.func @transform_0(%arg0: i32, %arg1: i32) -> (i32, i32) {
    %c0_i32 = arith.constant 0 : i32
    %c0_i32_0 = arith.constant 0 : i32
    return %c0_i32, %arg1 : i32, i32
  }
  func.func @transform_1(%arg0: i32, %arg1: i32) -> (i32, i32) {
    %c0_i32 = arith.constant 0 : i32
    %c0_i32_0 = arith.constant 0 : i32
    return %arg1, %c0_i32 : i32, i32
  }
  func.func @transform_2(%arg0: i32, %arg1: i32) -> (i32, i32) {
    %c0_i32 = arith.constant 0 : i32
    %c0_i32_0 = arith.constant 0 : i32
    return %arg0, %c0_i32 : i32, i32
  }
  func.func @transform_3(%arg0: i32, %arg1: i32) -> (i32, i32) {
    %c0_i32 = arith.constant 0 : i32
    %c0_i32_0 = arith.constant 0 : i32
    %c0_i32_1 = arith.constant 0 : i32
    return %c0_i32, %c0_i32_0 : i32, i32
  }
  func.func @transform_4(%arg0: i32, %arg1: i32) -> (i32, i32) {
    %c0_i32 = arith.constant 0 : i32
    %c0_i32_0 = arith.constant 0 : i32
    %c0_i32_1 = arith.constant 0 : i32
    return %c0_i32, %c0_i32_0 : i32, i32
  }
  func.func @transform_5(%arg0: i32, %arg1: i32) -> (i32, i32) {
    %c0_i32 = arith.constant 0 : i32
    %c0_i32_0 = arith.constant 0 : i32
    %c0_i32_1 = arith.constant 0 : i32
    return %c0_i32, %c0_i32_0 : i32, i32
  }
  func.func @transform_6(%arg0: i32, %arg1: i32) -> (i32, i32) {
    %c0_i32 = arith.constant 0 : i32
    %c0_i32_0 = arith.constant 0 : i32
    return %arg0, %c0_i32 : i32, i32
  }
}

module attributes {stable_mosaic.version = 11 : i64} {
  func.func @kernel(%arg0: i32, %arg1: memref<1x128xi32, #tpu.memory_space<vmem>>, %arg2: memref<128x16xf32, #tpu.memory_space<vmem>>, %arg3: memref<1x128xi32, #tpu.memory_space<vmem>>, %arg4: memref<128x16xf32, #tpu.memory_space<vmem>>, %arg5: memref<2x8xf32, #tpu.memory_space<vmem>>, %arg6: memref<16x16xf32, #tpu.memory_space<vmem>>, %arg7: memref<16x16xf32, #tpu.memory_space<vmem>>, %arg8: memref<8x16xf32, #tpu.memory_space<vmem>>, %arg9: memref<1x16xf32, #tpu.memory_space<vmem>>, %arg10: memref<2x16xf32, #tpu.memory_space<vmem>>, %arg11: memref<2x16xf32, #tpu.memory_space<vmem>>, %arg12: memref<2x1xf32, #tpu.memory_space<vmem>>, %arg13: memref<2x16xf32, #tpu.memory_space<vmem>>, %arg14: memref<2x1xf32, #tpu.memory_space<vmem>>) attributes {dimension_semantics = [#tpu.dimension_semantics<arbitrary>], iteration_bounds = array<i64: 1>, scalar_prefetch = 0 : i64, scratch_operands = 4 : i64, tpu.core_type = #tpu.core_type<tc>, window_params = [{transform_indices = @transform_0, window_bounds = array<i64: 1, 128>}, {transform_indices = @transform_1, window_bounds = array<i64: 128, 16>}, {transform_indices = @transform_2, window_bounds = array<i64: 1, 128>}, {transform_indices = @transform_3, window_bounds = array<i64: 128, 16>}, {pipeline_mode = #tpu.pipeline_mode<synchronous>, transform_indices = @transform_4, window_bounds = array<i64: 2, 8>}, {pipeline_mode = #tpu.pipeline_mode<synchronous>, transform_indices = @transform_5, window_bounds = array<i64: 16, 16>}, {pipeline_mode = #tpu.pipeline_mode<synchronous>, transform_indices = @transform_6, window_bounds = array<i64: 16, 16>}, {pipeline_mode = #tpu.pipeline_mode<synchronous>, transform_indices = @transform_7, window_bounds = array<i64: 8, 16>}, {pipeline_mode = #tpu.pipeline_mode<synchronous>, transform_indices = @transform_8, window_bounds = array<i64: 1, 16>}, {pipeline_mode = #tpu.pipeline_mode<synchronous>, transform_indices = @transform_9, window_bounds = array<i64: 2, 16>}]} {
    %c0_i32 = arith.constant 0 : i32
    %0 = arith.cmpi eq, %arg0, %c0_i32 : i32
    %1 = arith.extui %0 : i1 to i32
    %c0_i32_0 = arith.constant 0 : i32
    %2 = arith.cmpi ne, %1, %c0_i32_0 : i32
    scf.if %2 {
      %cst = arith.constant 0.000000e+00 : f32
      %12 = vector.broadcast %cst : f32 to vector<2x16xf32>
      %c0 = arith.constant 0 : index
      %c0_6 = arith.constant 0 : index
      %13 = vector.load %arg11[%c0, %c0_6] : memref<2x16xf32, #tpu.memory_space<vmem>>, vector<2x16xf32>
      tpu.vector_store %arg11[%c0, %c0_6], %12 {strides = array<i32>} : memref<2x16xf32, #tpu.memory_space<vmem>>, vector<2x16xf32>,
      %cst_7 = arith.constant 0.000000e+00 : f32
      %14 = vector.broadcast %cst_7 : f32 to vector<2x1xf32>
      %c0_8 = arith.constant 0 : index
      %c0_9 = arith.constant 0 : index
      %15 = vector.load %arg12[%c0_8, %c0_9] : memref<2x1xf32, #tpu.memory_space<vmem>>, vector<2x1xf32>
      tpu.vector_store %arg12[%c0_8, %c0_9], %14 {strides = array<i32>} : memref<2x1xf32, #tpu.memory_space<vmem>>, vector<2x1xf32>,
      %cst_10 = arith.constant 0.000000e+00 : f32
      %16 = vector.broadcast %cst_10 : f32 to vector<2x16xf32>
      %c0_11 = arith.constant 0 : index
      %c0_12 = arith.constant 0 : index
      %17 = vector.load %arg13[%c0_11, %c0_12] : memref<2x16xf32, #tpu.memory_space<vmem>>, vector<2x16xf32>
      tpu.vector_store %arg13[%c0_11, %c0_12], %16 {strides = array<i32>} : memref<2x16xf32, #tpu.memory_space<vmem>>, vector<2x16xf32>,
      %cst_13 = arith.constant 0.000000e+00 : f32
      %18 = vector.broadcast %cst_13 : f32 to vector<2x1xf32>
      %c0_14 = arith.constant 0 : index
      %c0_15 = arith.constant 0 : index
      %19 = vector.load %arg14[%c0_14, %c0_15] : memref<2x1xf32, #tpu.memory_space<vmem>>, vector<2x1xf32>
      tpu.vector_store %arg14[%c0_14, %c0_15], %18 {strides = array<i32>} : memref<2x1xf32, #tpu.memory_space<vmem>>, vector<2x1xf32>,
    } else {
    }
    %c1_i32 = arith.constant 1 : i32
    %3 = arith.cmpi slt, %arg0, %c1_i32 : i32
    %4 = arith.extui %3 : i1 to i32
    %c0_i32_1 = arith.constant 0 : i32
    %5 = arith.cmpi ne, %4, %c0_i32_1 : i32
    scf.if %5 {
      %c0 = arith.constant 0 : index
      %c0_6 = arith.constant 0 : index
      %12 = vector.load %arg1[%c0, %c0_6] : memref<1x128xi32, #tpu.memory_space<vmem>>, vector<1x128xi32>
      %13 = tpu.iota {dimensions = array<i32: 0>} : vector<2x128xi32>
      %14 = vector.broadcast %12 : vector<1x128xi32> to vector<2x128xi32>
      %15 = arith.cmpi eq, %13, %14 : vector<2x128xi32>
      %16 = arith.extui %15 : vector<2x128xi1> to vector<2x128xi32>
      %17 = arith.sitofp %16 : vector<2x128xi32> to vector<2x128xf32>
      %c0_7 = arith.constant 0 : index
      %c0_8 = arith.constant 0 : index
      %18 = vector.load %arg11[%c0_7, %c0_8] : memref<2x16xf32, #tpu.memory_space<vmem>>, vector<2x16xf32>
      %c0_9 = arith.constant 0 : index
      %c0_10 = arith.constant 0 : index
      %19 = vector.load %arg2[%c0_9, %c0_10] : memref<128x16xf32, #tpu.memory_space<vmem>>, vector<128x16xf32>
      %cst = arith.constant dense<0.000000e+00> : vector<2x16xf32>
      %20 = tpu.matmul %17, %19, %cst {dimension_numbers = #tpu.dot_dimension_numbers<[1], [0], [0], [1], [0, 0, 1, 1], [], []>} : vector<2x128xf32>, vector<128x16xf32>, vector<2x16xf32> -> vector<2x16xf32>
      %21 = arith.addf %18, %20 : vector<2x16xf32>
      %c0_11 = arith.constant 0 : index
      %c0_12 = arith.constant 0 : index
      %22 = vector.load %arg11[%c0_11, %c0_12] : memref<2x16xf32, #tpu.memory_space<vmem>>, vector<2x16xf32>
      tpu.vector_store %arg11[%c0_11, %c0_12], %21 {strides = array<i32>} : memref<2x16xf32, #tpu.memory_space<vmem>>, vector<2x16xf32>,
      %c0_13 = arith.constant 0 : index
      %c0_14 = arith.constant 0 : index
      %23 = vector.load %arg12[%c0_13, %c0_14] : memref<2x1xf32, #tpu.memory_space<vmem>>, vector<2x1xf32>
      %cst_15 = arith.constant dense<0.000000e+00> : vector<2xf32>
      %24 = vector.multi_reduction <add>, %17, %cst_15 [1] : vector<2x128xf32> to vector<2xf32>
      %25 = vector.shape_cast %24 : vector<2xf32> to vector<2x1xf32>
      %26 = arith.addf %23, %25 : vector<2x1xf32>
      %c0_16 = arith.constant 0 : index
      %c0_17 = arith.constant 0 : index
      %27 = vector.load %arg12[%c0_16, %c0_17] : memref<2x1xf32, #tpu.memory_space<vmem>>, vector<2x1xf32>
      tpu.vector_store %arg12[%c0_16, %c0_17], %26 {strides = array<i32>} : memref<2x1xf32, #tpu.memory_space<vmem>>, vector<2x1xf32>,
    } else {
    }
    %c1_i32_2 = arith.constant 1 : i32
    %6 = arith.cmpi slt, %arg0, %c1_i32_2 : i32
    %7 = arith.extui %6 : i1 to i32
    %c0_i32_3 = arith.constant 0 : i32
    %8 = arith.cmpi ne, %7, %c0_i32_3 : i32
    scf.if %8 {
      %c0 = arith.constant 0 : index
      %c0_6 = arith.constant 0 : index
      %12 = vector.load %arg3[%c0, %c0_6] : memref<1x128xi32, #tpu.memory_space<vmem>>, vector<1x128xi32>
      %13 = tpu.iota {dimensions = array<i32: 0>} : vector<2x128xi32>
      %14 = vector.broadcast %12 : vector<1x128xi32> to vector<2x128xi32>
      %15 = arith.cmpi eq, %13, %14 : vector<2x128xi32>
      %16 = arith.extui %15 : vector<2x128xi1> to vector<2x128xi32>
      %17 = arith.sitofp %16 : vector<2x128xi32> to vector<2x128xf32>
      %c0_7 = arith.constant 0 : index
      %c0_8 = arith.constant 0 : index
      %18 = vector.load %arg13[%c0_7, %c0_8] : memref<2x16xf32, #tpu.memory_space<vmem>>, vector<2x16xf32>
      %c0_9 = arith.constant 0 : index
      %c0_10 = arith.constant 0 : index
      %19 = vector.load %arg4[%c0_9, %c0_10] : memref<128x16xf32, #tpu.memory_space<vmem>>, vector<128x16xf32>
      %cst = arith.constant dense<0.000000e+00> : vector<2x16xf32>
      %20 = tpu.matmul %17, %19, %cst {dimension_numbers = #tpu.dot_dimension_numbers<[1], [0], [0], [1], [0, 0, 1, 1], [], []>} : vector<2x128xf32>, vector<128x16xf32>, vector<2x16xf32> -> vector<2x16xf32>
      %21 = arith.addf %18, %20 : vector<2x16xf32>
      %c0_11 = arith.constant 0 : index
      %c0_12 = arith.constant 0 : index
      %22 = vector.load %arg13[%c0_11, %c0_12] : memref<2x16xf32, #tpu.memory_space<vmem>>, vector<2x16xf32>
      tpu.vector_store %arg13[%c0_11, %c0_12], %21 {strides = array<i32>} : memref<2x16xf32, #tpu.memory_space<vmem>>, vector<2x16xf32>,
      %c0_13 = arith.constant 0 : index
      %c0_14 = arith.constant 0 : index
      %23 = vector.load %arg14[%c0_13, %c0_14] : memref<2x1xf32, #tpu.memory_space<vmem>>, vector<2x1xf32>
      %cst_15 = arith.constant dense<0.000000e+00> : vector<2xf32>
      %24 = vector.multi_reduction <add>, %17, %cst_15 [1] : vector<2x128xf32> to vector<2xf32>
      %25 = vector.shape_cast %24 : vector<2xf32> to vector<2x1xf32>
      %26 = arith.addf %23, %25 : vector<2x1xf32>
      %c0_16 = arith.constant 0 : index
      %c0_17 = arith.constant 0 : index
      %27 = vector.load %arg14[%c0_16, %c0_17] : memref<2x1xf32, #tpu.memory_space<vmem>>, vector<2x1xf32>
      tpu.vector_store %arg14[%c0_16, %c0_17], %26 {strides = array<i32>} : memref<2x1xf32, #tpu.memory_space<vmem>>, vector<2x1xf32>,
    } else {
    }
    %c0_i32_4 = arith.constant 0 : i32
    %9 = arith.cmpi eq, %arg0, %c0_i32_4 : i32
    %10 = arith.extui %9 : i1 to i32
    %c0_i32_5 = arith.constant 0 : i32
    %11 = arith.cmpi ne, %10, %c0_i32_5 : i32
    scf.if %11 {
      %c0 = arith.constant 0 : index
      %c0_6 = arith.constant 0 : index
      %12 = vector.load %arg11[%c0, %c0_6] : memref<2x16xf32, #tpu.memory_space<vmem>>, vector<2x16xf32>
      %c0_7 = arith.constant 0 : index
      %c0_8 = arith.constant 0 : index
      %13 = vector.load %arg12[%c0_7, %c0_8] : memref<2x1xf32, #tpu.memory_space<vmem>>, vector<2x1xf32>
      %cst = arith.constant 1.000000e+00 : f32
      %14 = vector.broadcast %cst : f32 to vector<2x1xf32>
      %15 = arith.maximumf %13, %14 : vector<2x1xf32>
      %16 = vector.broadcast %15 : vector<2x1xf32> to vector<2x16xf32>
      %17 = arith.divf %12, %16 : vector<2x16xf32>
      %c0_9 = arith.constant 0 : index
      %c0_10 = arith.constant 0 : index
      %18 = vector.load %arg13[%c0_9, %c0_10] : memref<2x16xf32, #tpu.memory_space<vmem>>, vector<2x16xf32>
      %c0_11 = arith.constant 0 : index
      %c0_12 = arith.constant 0 : index
      %19 = vector.load %arg14[%c0_11, %c0_12] : memref<2x1xf32, #tpu.memory_space<vmem>>, vector<2x1xf32>
      %cst_13 = arith.constant 1.000000e+00 : f32
      %20 = vector.broadcast %cst_13 : f32 to vector<2x1xf32>
      %21 = arith.maximumf %19, %20 : vector<2x1xf32>
      %22 = vector.broadcast %21 : vector<2x1xf32> to vector<2x16xf32>
      %23 = arith.divf %18, %22 : vector<2x16xf32>
      %c0_14 = arith.constant 0 : index
      %c0_15 = arith.constant 0 : index
      %24 = vector.load %arg6[%c0_14, %c0_15] : memref<16x16xf32, #tpu.memory_space<vmem>>, vector<16x16xf32>
      %cst_16 = arith.constant dense<0.000000e+00> : vector<2x16xf32>
      %25 = tpu.matmul %17, %24, %cst_16 {dimension_numbers = #tpu.dot_dimension_numbers<[1], [0], [0], [1], [0, 0, 1, 1], [], []>} : vector<2x16xf32>, vector<16x16xf32>, vector<2x16xf32> -> vector<2x16xf32>
      %c0_17 = arith.constant 0 : index
      %c0_18 = arith.constant 0 : index
      %26 = vector.load %arg7[%c0_17, %c0_18] : memref<16x16xf32, #tpu.memory_space<vmem>>, vector<16x16xf32>
      %cst_19 = arith.constant dense<0.000000e+00> : vector<2x16xf32>
      %27 = tpu.matmul %23, %26, %cst_19 {dimension_numbers = #tpu.dot_dimension_numbers<[1], [0], [0], [1], [0, 0, 1, 1], [], []>} : vector<2x16xf32>, vector<16x16xf32>, vector<2x16xf32> -> vector<2x16xf32>
      %28 = arith.addf %25, %27 : vector<2x16xf32>
      %c0_20 = arith.constant 0 : index
      %c0_21 = arith.constant 0 : index
      %29 = vector.load %arg5[%c0_20, %c0_21] : memref<2x8xf32, #tpu.memory_space<vmem>>, vector<2x8xf32>
      %c0_22 = arith.constant 0 : index
      %c0_23 = arith.constant 0 : index
      %30 = vector.load %arg8[%c0_22, %c0_23] : memref<8x16xf32, #tpu.memory_space<vmem>>, vector<8x16xf32>
      %cst_24 = arith.constant dense<0.000000e+00> : vector<2x16xf32>
      %31 = tpu.matmul %29, %30, %cst_24 {dimension_numbers = #tpu.dot_dimension_numbers<[1], [0], [0], [1], [0, 0, 1, 1], [], []>} : vector<2x8xf32>, vector<8x16xf32>, vector<2x16xf32> -> vector<2x16xf32>
      %32 = arith.addf %28, %31 : vector<2x16xf32>
      %c0_25 = arith.constant 0 : index
      %c0_26 = arith.constant 0 : index
      %33 = vector.load %arg9[%c0_25, %c0_26] : memref<1x16xf32, #tpu.memory_space<vmem>>, vector<1x16xf32>
      %34 = vector.broadcast %33 : vector<1x16xf32> to vector<2x16xf32>
      %35 = arith.addf %32, %34 : vector<2x16xf32>
      %cst_27 = arith.constant 0.000000e+00 : f32
      %36 = vector.broadcast %cst_27 : f32 to vector<2x16xf32>
      %37 = arith.maximumf %35, %36 : vector<2x16xf32>
      %c0_28 = arith.constant 0 : index
      %c0_29 = arith.constant 0 : index
      %38 = vector.load %arg10[%c0_28, %c0_29] : memref<2x16xf32, #tpu.memory_space<vmem>>, vector<2x16xf32>
      tpu.vector_store %arg10[%c0_28, %c0_29], %37 {strides = array<i32>} : memref<2x16xf32, #tpu.memory_space<vmem>>, vector<2x16xf32>,
    } else {
    }
    return
  }
  func.func @transform_0(%arg0: i32) -> (i32, i32) {
    %c0_i32 = arith.constant 0 : i32
    %0 = arith.minsi %arg0, %c0_i32 : i32
    %c0_i32_0 = arith.constant 0 : i32
    %c0_i32_1 = arith.constant 0 : i32
    return %c0_i32_0, %0 : i32, i32
  }
  func.func @transform_1(%arg0: i32) -> (i32, i32) {
    %c0_i32 = arith.constant 0 : i32
    %0 = arith.minsi %arg0, %c0_i32 : i32
    %c0_i32_0 = arith.constant 0 : i32
    %c0_i32_1 = arith.constant 0 : i32
    return %0, %c0_i32_0 : i32, i32
  }
  func.func @transform_2(%arg0: i32) -> (i32, i32) {
    %c0_i32 = arith.constant 0 : i32
    %0 = arith.minsi %arg0, %c0_i32 : i32
    %c0_i32_0 = arith.constant 0 : i32
    %c0_i32_1 = arith.constant 0 : i32
    return %c0_i32_0, %0 : i32, i32
  }
  func.func @transform_3(%arg0: i32) -> (i32, i32) {
    %c0_i32 = arith.constant 0 : i32
    %0 = arith.minsi %arg0, %c0_i32 : i32
    %c0_i32_0 = arith.constant 0 : i32
    %c0_i32_1 = arith.constant 0 : i32
    return %0, %c0_i32_0 : i32, i32
  }
  func.func @transform_4(%arg0: i32) -> (i32, i32) {
    %c0_i32 = arith.constant 0 : i32
    %c0_i32_0 = arith.constant 0 : i32
    %c0_i32_1 = arith.constant 0 : i32
    return %c0_i32, %c0_i32_0 : i32, i32
  }
  func.func @transform_5(%arg0: i32) -> (i32, i32) {
    %c0_i32 = arith.constant 0 : i32
    %c0_i32_0 = arith.constant 0 : i32
    %c0_i32_1 = arith.constant 0 : i32
    return %c0_i32, %c0_i32_0 : i32, i32
  }
  func.func @transform_6(%arg0: i32) -> (i32, i32) {
    %c0_i32 = arith.constant 0 : i32
    %c0_i32_0 = arith.constant 0 : i32
    %c0_i32_1 = arith.constant 0 : i32
    return %c0_i32, %c0_i32_0 : i32, i32
  }
  func.func @transform_7(%arg0: i32) -> (i32, i32) {
    %c0_i32 = arith.constant 0 : i32
    %c0_i32_0 = arith.constant 0 : i32
    %c0_i32_1 = arith.constant 0 : i32
    return %c0_i32, %c0_i32_0 : i32, i32
  }
  func.func @transform_8(%arg0: i32) -> (i32, i32) {
    %c0_i32 = arith.constant 0 : i32
    %c0_i32_0 = arith.constant 0 : i32
    %c0_i32_1 = arith.constant 0 : i32
    return %c0_i32, %c0_i32_0 : i32, i32
  }
  func.func @transform_9(%arg0: i32) -> (i32, i32) {
    %c0_i32 = arith.constant 0 : i32
    %c0_i32_0 = arith.constant 0 : i32
    %c0_i32_1 = arith.constant 0 : i32
    return %c0_i32, %c0_i32_0 : i32, i32
  }
}

</mosaic_0001>

<llo_original>
// kernel: message_passing.3
$region0: #{message_passing.3}
  #allocation0 [shape = 'u32[]', space=smem, size = 0x4, offset = 0x4, fixed_abs, tag = 'smem constant byte address 0x4 - core index']
  #allocation1 [shape = 'u32[72,128]{1,0:T(1,128)}', space=vmem, size = 0x9000, scoped, tag = 'internal scratch']
  %s0 = inlined_call_operand.vmem [shape: f32[128,24], index: 0, kind: input, shape index: {}]
  %s1 = inlined_call_operand.vmem [shape: f32[24,16], index: 1, kind: input, shape index: {}]
  %s2 = inlined_call_operand.vmem [shape: f32[1,16], index: 2, kind: input, shape index: {}]
  %s3 = inlined_call_operand.vmem [shape: f32[128,16], index: 3, kind: output, shape index: {}]
  %s4 = sld [smem:[#allocation0]]
  $region45: #{message_passing.3} parent=0
    _
  %s6 = ssub.s32 1, %s4
  %s7 = scalar_select 0, %s6, %s4
  loop: start=0, step=1, limit=4
  $region2: #{message_passing.3} parent=0 // loop_pre_header
    _
  $region3: #{message_passing.3} parent=0 // loop_header
    %s9 = sphi 0, %s13
    %p10 = scmp.ge.s32.totalorder %s9, 4
    %s19 = sphi 0, %s21
    %s22 = sphi 0, %s19
    %s23 = sphi 0, %s22
    %s39 = sphi 0, %s23
    %s43 = sphi 0, %s43
    %s45 = sphi 0, %s43
    %s46 = sphi 0, %s45
    %s60 = sphi 0, %s46
    %s64 = sphi 0, %s64
    %s66 = sphi 0, %s64
    %s67 = sphi 0, %s66
    %s81 = sphi 0, %s67
    %s87 = sphi 0, %s89
    %s90 = sphi 0, %s87
    %s91 = sphi 0, %s90
    %s107 = sphi 0, %s91
  $region4: #{message_passing.3} parent=0 // loop_header_branch
    %12 = sbr.rel (%p10) target = $region8
  $region5: #{message_passing.3} parent=0 // loop_body
    %s14 = ssub.s32 %s9, 1
    %s15 = ssub.s32 %s9, 2
    %s16 = sadd.s32 %s9, 1
    %s17 = ssub.s32 %s9, %s16
    %p18 = scmp.eq.s32.totalorder %s17, 0
    %s20 = sadd.s32 %s19, 1
    %s21 = scalar_select %p18, %s19, %s20
    %p24 = pneg %p18
    %p25 = scmp.eq.s32.totalorder %s9, 1
    %p26 = por %p24, %p25
    %p27 = scmp.ne.s32.totalorder %s19, %s22
    %p28 = scmp.eq.s32.totalorder %s9, 0
    %p29 = por %p27, %p28
    %p30 = scmp.ne.s32.totalorder %s19, %s22
    %p31 = scmp.eq.s32.totalorder %s14, 1
    %p32 = por %p30, %p31
    %p33 = scmp.ne.s32.totalorder %s22, %s23
    %p34 = scmp.eq.s32.totalorder %s14, 0
    %p35 = por %p33, %p34
    %p36 = scmp.ne.s32.totalorder %s22, %s23
    %p37 = scmp.eq.s32.totalorder %s15, 1
    %p38 = por %p36, %p37
    %p40 = scmp.ne.s32.totalorder %s23, %s39
    %p41 = scmp.eq.s32.totalorder %s15, 0
    %p42 = por %p40, %p41
    %s44 = sadd.s32 %s43, 1
    %p47 = scmp.eq.s32.totalorder %s9, 1
    %p48 = scmp.ne.s32.totalorder %s43, %s45
    %p49 = scmp.eq.s32.totalorder %s9, 0
    %p50 = por %p48, %p49
    %p51 = scmp.ne.s32.totalorder %s43, %s45
    %p52 = scmp.eq.s32.totalorder %s14, 1
    %p53 = por %p51, %p52
    %p54 = scmp.ne.s32.totalorder %s45, %s46
    %p55 = scmp.eq.s32.totalorder %s14, 0
    %p56 = por %p54, %p55
    %p57 = scmp.ne.s32.totalorder %s45, %s46
    %p58 = scmp.eq.s32.totalorder %s15, 1
    %p59 = por %p57, %p58
    %p61 = scmp.ne.s32.totalorder %s46, %s60
    %p62 = scmp.eq.s32.totalorder %s15, 0
    %p63 = por %p61, %p62
    %s65 = sadd.s32 %s64, 1
    %p68 = scmp.eq.s32.totalorder %s9, 1
    %p69 = scmp.ne.s32.totalorder %s64, %s66
    %p70 = scmp.eq.s32.totalorder %s9, 0
    %p71 = por %p69, %p70
    %p72 = scmp.ne.s32.totalorder %s64, %s66
    %p73 = scmp.eq.s32.totalorder %s14, 1
    %p74 = por %p72, %p73
    %p75 = scmp.ne.s32.totalorder %s66, %s67
    %p76 = scmp.eq.s32.totalorder %s14, 0
    %p77 = por %p75, %p76
    %p78 = scmp.ne.s32.totalorder %s66, %s67
    %p79 = scmp.eq.s32.totalorder %s15, 1
    %p80 = por %p78, %p79
    %p82 = scmp.ne.s32.totalorder %s67, %s81
    %p83 = scmp.eq.s32.totalorder %s15, 0
    %p84 = por %p82, %p83
    %s85 = ssub.s32 %s9, %s16
    %p86 = scmp.eq.s32.totalorder %s85, 0
    %s88 = sadd.s32 %s87, 1
    %s89 = scalar_select %p86, %s87, %s88
    %p92 = pneg %p86
    %p93 = scmp.eq.s32.totalorder %s9, 1
    %p94 = por %p92, %p93
    %p95 = scmp.ne.s32.totalorder %s87, %s90
    %p96 = scmp.eq.s32.totalorder %s9, 0
    %p97 = por %p95, %p96
    %p98 = scmp.ne.s32.totalorder %s87, %s90
    %p99 = scmp.eq.s32.totalorder %s14, 1
    %p100 = por %p98, %p99
    %p101 = scmp.ne.s32.totalorder %s90, %s91
    %p102 = scmp.eq.s32.totalorder %s14, 0
    %p103 = por %p101, %p102
    %p104 = scmp.ne.s32.totalorder %s90, %s91
    %p105 = scmp.eq.s32.totalorder %s15, 1
    %p106 = por %p104, %p105
    %p108 = scmp.ne.s32.totalorder %s91, %s107
    %p109 = scmp.eq.s32.totalorder %s15, 0
    %p110 = por %p108, %p109
    %p111 = scmp.le.s32.totalorder 1, %s9
    %p112 = scmp.lt.s32.totalorder %s9, 3
    %p113 = pnand %p111, %p112
    %p114 = pneg %p113
    // Predicated region
    $region9: #{message_passing.3} parent=5 // pred_check
      _
    $region10: #{message_passing.3} parent=5 // pred_check_branch
      %116 = sbr.rel (%p113) target = $region12
    $region11: #{message_passing.3} parent=5 // pred_region
      %s117 = ssub.s32 %s9, 1
      // Predicated region
      $region13: #{message_passing.3} parent=11 // pred_check
        %p118 = pneg %p56
      $region14: #{message_passing.3} parent=11 // pred_check_branch
        %120 = sbr.rel (%p118) target = $region16
      $region15: #{message_passing.3} parent=11 // pred_region
        _
      $region16: #{message_passing.3} parent=11 // pred_fallthru
        _
      // Predicated region
      $region17: #{message_passing.3} parent=11 // pred_check
        %p121 = pneg %p77
      $region18: #{message_passing.3} parent=11 // pred_check_branch
        %123 = sbr.rel (%p121) target = $region20
      $region19: #{message_passing.3} parent=11 // pred_region
        _
      $region20: #{message_passing.3} parent=11 // pred_fallthru
        _
    $region12: #{message_passing.3} parent=5 // pred_fallthru
      _
    %p124 = scmp.lt.s32.totalorder %s9, 2
    // Predicated region
    $region21: #{message_passing.3} parent=5 // pred_check
      %p125 = pneg %p124
    $region22: #{message_passing.3} parent=5 // pred_check_branch
      %127 = sbr.rel (%p125) target = $region24
    $region23: #{message_passing.3} parent=5 // pred_region
      // Predicated region
      $region25: #{message_passing.3} parent=23 // pred_check
        %p128 = pneg %p29
      $region26: #{message_passing.3} parent=23 // pred_check_branch
        %130 = sbr.rel (%p128) target = $region28
      $region27: #{message_passing.3} parent=23 // pred_region
        %s131 = smul.u32 8, %s9
        %p132 = scmp.lt.s32.totalorder %s131, 15
        %s133 = scalar_select %p132, %s131, 15
        %s134 = smul.addr %s133, 8
        %s135 = scalar_lea.vmem %s0, %s134
        %s136 = smul.u32 8, %s9
      $region28: #{message_passing.3} parent=23 // pred_fallthru
        _
    $region24: #{message_passing.3} parent=5 // pred_fallthru
      _
    %p137 = scmp.le.s32.totalorder 1, %s9
    %p138 = scmp.lt.s32.totalorder %s9, 3
    %p139 = pnand %p137, %p138
    %p140 = pneg %p139
    // Predicated region
    $region29: #{message_passing.3} parent=5 // pred_check
      _
    $region30: #{message_passing.3} parent=5 // pred_check_branch
      %142 = sbr.rel (%p139) target = $region32
    $region31: #{message_passing.3} parent=5 // pred_region
      %s143 = ssub.s32 %s9, 1
      %s144 = smul.u32 8, %s14
      %p145 = scmp.lt.s32.totalorder %s144, 15
      %s146 = scalar_select %p145, %s144, 15
      %s147 = smul.addr %s146, 8
      %s148 = scalar_lea.vmem %s0, %s147
      %p149 = pneg %p35
      %p150 = pneg %p32
      %p151 = pneg %p56
      %p152 = pneg %p53
      %p153 = pneg %p77
      %p154 = pneg %p74
      %p155 = pneg %p103
      %p156 = pneg %p100
      %s157 = smul.u32 8, %s14
      %p158 = scmp.lt.s32.totalorder %s157, 15
      %s159 = scalar_select %p158, %s157, 15
      %s160 = smul.addr %s159, 8
      %s161 = scalar_lea.vmem %s3, %s160
      %s162 = smul.u32 8, %s14
      %p163 = scmp.lt.s32.totalorder %s162, 15
      %s164 = scalar_select %p163, %s162, 15
      %s165 = smul.addr %s164, 8
      %s166 = scalar_lea.vmem %s0, %s165
      %s167 = smul.u32 8, %s14
      %s168 = smul.u32 8, %s14
      %p169 = scmp.lt.s32.totalorder %s168, 15
      %s170 = scalar_select %p169, %s168, 15
      %s171 = smul.addr %s170, 8
      %s172 = scalar_lea.vmem %s3, %s171
      %s173 = smul.u32 8, %s14
      %v174 = vld [vmem:[%s166] sm:$0xff]
      %v175 = vld [vmem:[%s166 + $0x8] sm:$0xff]
      %v176 = vld [vmem:[%s166 + $0x10] sm:$0xff]
      %v177 = vld [vmem:[%s166 + $0x18] sm:$0xff]
      %v178 = vld [vmem:[%s166 + $0x20] sm:$0xff]
      %v179 = vld [vmem:[%s166 + $0x28] sm:$0xff]
      %v180 = vld [vmem:[%s166 + $0x30] sm:$0xff]
      %v181 = vld [vmem:[%s166 + $0x38] sm:$0xff]
      %v182 = vld [vmem:[%s1] sm:$0xff]
      %v183 = vld [vmem:[%s1 + $0x8] sm:$0xff]
      %v184 = vld [vmem:[%s1 + $0x10] sm:$0xff]
      %v185 = vld [vmem:[%s2] sm:$0x1]
      %v187 = vperm.slane %v185, 0
      %vm189 = vcmask 195584
      %v191 = vsel %vm189, %v174, 0
      %v194 = vsel %vm189, %v175, 0
      %v197 = vsel %vm189, %v176, 0
      %v200 = vsel %vm189, %v177, 0
      %v203 = vsel %vm189, %v178, 0
      %v206 = vsel %vm189, %v179, 0
      %v209 = vsel %vm189, %v180, 0
      %v212 = vsel %vm189, %v181, 0
      %214 = vmatpush.msra.mxu0 0.0
      %215 = vmatpush.msra.mxu0 0.0
      %216 = vmatpush.msra.mxu0 0.0
      %217 = vmatpush.msra.mxu0 0.0
      %218 = vmatpush.msra.mxu0 0.0
      %219 = vmatpush.msra.mxu0 0.0
      %220 = vmatpush.msra.mxu0 0.0
      %221 = vmatpush.msra.mxu0 0.0
      %222 = vmatpush.msra.mxu0 0.0
      %223 = vmatpush.msra.mxu0 0.0
      %224 = vmatpush.msra.mxu0 0.0
      %225 = vmatpush.msra.mxu0 0.0
      %226 = vmatpush.msra.mxu0 0.0
      %227 = vmatpush.msra.mxu0 %v184
      %228 = vmatpush.msra.mxu0 %v183
      %229 = vmatpush.msra.mxu0 %v182
      %230 = vmatmul.f32.gmra.mxu0 %v191
      %v231 = vpop.f32.mrf.mxu0
      %v232 = vadd.f32 %v187, %v231
      %233 = vmatmul.f32.gmra.mxu0 %v194
      %v234 = vpop.f32.mrf.mxu0
      %v235 = vadd.f32 %v187, %v234
      %236 = vmatmul.f32.gmra.mxu0 %v197
      %v237 = vpop.f32.mrf.mxu0
      %v238 = vadd.f32 %v187, %v237
      %239 = vmatmul.f32.gmra.mxu0 %v200
      %v240 = vpop.f32.mrf.mxu0
      %v241 = vadd.f32 %v187, %v240
      %242 = vmatmul.f32.gmra.mxu0 %v203
      %v243 = vpop.f32.mrf.mxu0
      %v244 = vadd.f32 %v187, %v243
      %245 = vmatmul.f32.gmra.mxu0 %v206
      %v246 = vpop.f32.mrf.mxu0
      %v247 = vadd.f32 %v187, %v246
      %248 = vmatmul.f32.gmra.mxu0 %v209
      %v249 = vpop.f32.mrf.mxu0
      %v250 = vadd.f32 %v187, %v249
      %251 = vmatmul.f32.gmra.mxu0 %v212
      %v252 = vpop.f32.mrf.mxu0
      %v253 = vadd.f32 %v187, %v252
      %254 = vdwg.mxu0
      %v255 = vmax.f32 %v232, 0.0
      %v256 = vmax.f32 %v235, 0.0
      %v257 = vmax.f32 %v238, 0.0
      %v258 = vmax.f32 %v241, 0.0
      %v259 = vmax.f32 %v244, 0.0
      %v260 = vmax.f32 %v247, 0.0
      %v261 = vmax.f32 %v250, 0.0
      %v262 = vmax.f32 %v253, 0.0
      %vm263 = vcmask 130048
      %264 = vst.msk [vmem:[%s172] sm:$0xff] %vm263, %v255
      %265 = vst.msk [vmem:[%s172 + $0x8] sm:$0xff] %vm263, %v256
      %266 = vst.msk [vmem:[%s172 + $0x10] sm:$0xff] %vm263, %v257
      %267 = vst.msk [vmem:[%s172 + $0x18] sm:$0xff] %vm263, %v258
      %268 = vst.msk [vmem:[%s172 + $0x20] sm:$0xff] %vm263, %v259
      %269 = vst.msk [vmem:[%s172 + $0x28] sm:$0xff] %vm263, %v260
      %270 = vst.msk [vmem:[%s172 + $0x30] sm:$0xff] %vm263, %v261
      %271 = vst.msk [vmem:[%s172 + $0x38] sm:$0xff] %vm263, %v262
      %s272 = smul.u32 8, %s14
      %p273 = scmp.lt.s32.totalorder %s272, 15
      %s274 = scalar_select %p273, %s272, 15
      %s275 = smul.addr %s274, 8
      %s276 = scalar_lea.vmem %s3, %s275
      // Predicated region
      $region33: #{message_passing.3} parent=31 // pred_check
        %p277 = pneg %p100
      $region34: #{message_passing.3} parent=31 // pred_check_branch
        %279 = sbr.rel (%p277) target = $region36
      $region35: #{message_passing.3} parent=31 // pred_region
        %s280 = smul.u32 8, %s14
      $region36: #{message_passing.3} parent=31 // pred_fallthru
        _
    $region32: #{message_passing.3} parent=5 // pred_fallthru
      _
    %p281 = scmp.le.s32.totalorder 2, %s9
    // Predicated region
    $region37: #{message_passing.3} parent=5 // pred_check
      %p282 = pneg %p281
    $region38: #{message_passing.3} parent=5 // pred_check_branch
      %284 = sbr.rel (%p282) target = $region40
    $region39: #{message_passing.3} parent=5 // pred_region
      %s285 = ssub.s32 %s9, 2
      // Predicated region
      $region41: #{message_passing.3} parent=39 // pred_check
        %p286 = pneg %p106
      $region42: #{message_passing.3} parent=39 // pred_check_branch
        %288 = sbr.rel (%p286) target = $region44
      $region43: #{message_passing.3} parent=39 // pred_region
        %s289 = smul.u32 8, %s15
        %p290 = scmp.lt.s32.totalorder %s289, 15
        %s291 = scalar_select %p290, %s289, 15
        %s292 = smul.addr %s291, 8
        %s293 = scalar_lea.vmem %s3, %s292
      $region44: #{message_passing.3} parent=39 // pred_fallthru
        _
    $region40: #{message_passing.3} parent=5 // pred_fallthru
      _
  $region6: #{message_passing.3} parent=0 // loop_footer
    %s13 = sadd.s32 1, %s9
  $region7: #{message_passing.3} parent=0 // loop_footer_branch
    %8 = sbr.rel target = $region3
  $region8: #{message_passing.3} parent=0 // loop_exit
    _

// kernel: message_passing.4
$region0: #{message_passing.4}
  #allocation0 [shape = 'u32[]', space=smem, size = 0x4, offset = 0x4, fixed_abs, tag = 'smem constant byte address 0x4 - core index']
  #allocation1 [shape = 'u32[72,128]{1,0:T(1,128)}', space=vmem, size = 0x9000, scoped, tag = 'internal scratch']
  #allocation2 [shape = 'f32[64,16]{1,0:T(8,128)}', space=vmem, size = 0x8000, scoped, tag = 'scratch operand']
  #allocation3 [shape = 'f32[64,1]{1,0:T(8,128)}', space=vmem, size = 0x8000, scoped, tag = 'scratch operand']
  %s0 = inlined_call_operand.vmem [shape: s32[1,128], index: 0, kind: input, shape index: {}]
  %s1 = inlined_call_operand.vmem [shape: f32[128,16], index: 1, kind: input, shape index: {}]
  %s2 = inlined_call_operand.vmem [shape: f32[128,16], index: 2, kind: input, shape index: {}]
  %s3 = inlined_call_operand.vmem [shape: f32[16,16], index: 3, kind: input, shape index: {}]
  %s4 = inlined_call_operand.vmem [shape: f32[16,16], index: 4, kind: input, shape index: {}]
  %s5 = inlined_call_operand.vmem [shape: f32[1,16], index: 5, kind: input, shape index: {}]
  %s6 = inlined_call_operand.vmem [shape: f32[128,16], index: 6, kind: output, shape index: {}]
  %s7 = sld [smem:[#allocation0]]
  $region65: #{message_passing.4} parent=0
    _
  %s9 = ssub.s32 1, %s7
  %s10 = scalar_select 0, %s9, %s7
  loop: start=0, step=1, limit=4
  $region2: #{message_passing.4} parent=0 // loop_pre_header
    _
  $region3: #{message_passing.4} parent=0 // loop_header
    %s12 = sphi 0, %s16
    %p13 = scmp.ge.s32.totalorder %s12, 4
    %s19 = sphi 0, %s31
    %s20 = sphi 0, %s27
    %s21 = sphi 0, %s19
    %s22 = sphi 0, %s20
    %s23 = sphi 0, %s21
    %s24 = sphi 0, %s22
    %s34 = sphi 0, %s36
    %s37 = sphi 0, %s34
    %s38 = sphi 0, %s37
    %s54 = sphi 0, %s38
    %s60 = sphi 0, %s62
    %s63 = sphi 0, %s60
    %s64 = sphi 0, %s63
    %s80 = sphi 0, %s64
    %s86 = sphi 0, %s88
    %s89 = sphi 0, %s86
    %s90 = sphi 0, %s89
    %s106 = sphi 0, %s90
    %s110 = sphi 0, %s110
    %s112 = sphi 0, %s110
    %s113 = sphi 0, %s112
    %s127 = sphi 0, %s113
    %s131 = sphi 0, %s131
    %s133 = sphi 0, %s131
    %s134 = sphi 0, %s133
    %s148 = sphi 0, %s134
    %s152 = sphi 0, %s152
    %s154 = sphi 0, %s152
    %s155 = sphi 0, %s154
    %s169 = sphi 0, %s155
    %s175 = sphi 0, %s177
    %s178 = sphi 0, %s175
    %s179 = sphi 0, %s178
    %s195 = sphi 0, %s179
  $region4: #{message_passing.4} parent=0 // loop_header_branch
    %15 = sbr.rel (%p13) target = $region8
  $region5: #{message_passing.4} parent=0 // loop_body
    %s17 = ssub.s32 %s12, 1
    %s18 = ssub.s32 %s12, 2
    %s25 = sadd.s32 1, %s20
    %p26 = scmp.ge.s32.totalorder %s25, 1
    %s27 = scalar_select %p26, 0, %s25
    %s28 = sadd.s32 1, %s19
    %s29 = scalar_select %p26, %s28, %s19
    %p30 = scmp.ge.s32.totalorder %s29, 2
    %s31 = scalar_select %p30, 0, %s29
    %s32 = ssub.s32 %s20, %s27
    %p33 = scmp.eq.s32.totalorder %s32, 0
    %s35 = sadd.s32 %s34, 1
    %s36 = scalar_select %p33, %s34, %s35
    %p39 = pneg %p33
    %p40 = scmp.eq.s32.totalorder %s12, 1
    %p41 = por %p39, %p40
    %p42 = scmp.ne.s32.totalorder %s34, %s37
    %p43 = scmp.eq.s32.totalorder %s12, 0
    %p44 = por %p42, %p43
    %p45 = scmp.ne.s32.totalorder %s34, %s37
    %p46 = scmp.eq.s32.totalorder %s17, 1
    %p47 = por %p45, %p46
    %p48 = scmp.ne.s32.totalorder %s37, %s38
    %p49 = scmp.eq.s32.totalorder %s17, 0
    %p50 = por %p48, %p49
    %p51 = scmp.ne.s32.totalorder %s37, %s38
    %p52 = scmp.eq.s32.totalorder %s18, 1
    %p53 = por %p51, %p52
    %p55 = scmp.ne.s32.totalorder %s38, %s54
    %p56 = scmp.eq.s32.totalorder %s18, 0
    %p57 = por %p55, %p56
    %s58 = ssub.s32 %s20, %s27
    %p59 = scmp.eq.s32.totalorder %s58, 0
    %s61 = sadd.s32 %s60, 1
    %s62 = scalar_select %p59, %s60, %s61
    %p65 = pneg %p59
    %p66 = scmp.eq.s32.totalorder %s12, 1
    %p67 = por %p65, %p66
    %p68 = scmp.ne.s32.totalorder %s60, %s63
    %p69 = scmp.eq.s32.totalorder %s12, 0
    %p70 = por %p68, %p69
    %p71 = scmp.ne.s32.totalorder %s60, %s63
    %p72 = scmp.eq.s32.totalorder %s17, 1
    %p73 = por %p71, %p72
    %p74 = scmp.ne.s32.totalorder %s63, %s64
    %p75 = scmp.eq.s32.totalorder %s17, 0
    %p76 = por %p74, %p75
    %p77 = scmp.ne.s32.totalorder %s63, %s64
    %p78 = scmp.eq.s32.totalorder %s18, 1
    %p79 = por %p77, %p78
    %p81 = scmp.ne.s32.totalorder %s64, %s80
    %p82 = scmp.eq.s32.totalorder %s18, 0
    %p83 = por %p81, %p82
    %s84 = ssub.s32 %s19, %s31
    %p85 = scmp.eq.s32.totalorder %s84, 0
    %s87 = sadd.s32 %s86, 1
    %s88 = scalar_select %p85, %s86, %s87
    %p91 = pneg %p85
    %p92 = scmp.eq.s32.totalorder %s12, 1
    %p93 = por %p91, %p92
    %p94 = scmp.ne.s32.totalorder %s86, %s89
    %p95 = scmp.eq.s32.totalorder %s12, 0
    %p96 = por %p94, %p95
    %p97 = scmp.ne.s32.totalorder %s86, %s89
    %p98 = scmp.eq.s32.totalorder %s17, 1
    %p99 = por %p97, %p98
    %p100 = scmp.ne.s32.totalorder %s89, %s90
    %p101 = scmp.eq.s32.totalorder %s17, 0
    %p102 = por %p100, %p101
    %p103 = scmp.ne.s32.totalorder %s89, %s90
    %p104 = scmp.eq.s32.totalorder %s18, 1
    %p105 = por %p103, %p104
    %p107 = scmp.ne.s32.totalorder %s90, %s106
    %p108 = scmp.eq.s32.totalorder %s18, 0
    %p109 = por %p107, %p108
    %s111 = sadd.s32 %s110, 1
    %p114 = scmp.eq.s32.totalorder %s12, 1
    %p115 = scmp.ne.s32.totalorder %s110, %s112
    %p116 = scmp.eq.s32.totalorder %s12, 0
    %p117 = por %p115, %p116
    %p118 = scmp.ne.s32.totalorder %s110, %s112
    %p119 = scmp.eq.s32.totalorder %s17, 1
    %p120 = por %p118, %p119
    %p121 = scmp.ne.s32.totalorder %s112, %s113
    %p122 = scmp.eq.s32.totalorder %s17, 0
    %p123 = por %p121, %p122
    %p124 = scmp.ne.s32.totalorder %s112, %s113
    %p125 = scmp.eq.s32.totalorder %s18, 1
    %p126 = por %p124, %p125
    %p128 = scmp.ne.s32.totalorder %s113, %s127
    %p129 = scmp.eq.s32.totalorder %s18, 0
    %p130 = por %p128, %p129
    %s132 = sadd.s32 %s131, 1
    %p135 = scmp.eq.s32.totalorder %s12, 1
    %p136 = scmp.ne.s32.totalorder %s131, %s133
    %p137 = scmp.eq.s32.totalorder %s12, 0
    %p138 = por %p136, %p137
    %p139 = scmp.ne.s32.totalorder %s131, %s133
    %p140 = scmp.eq.s32.totalorder %s17, 1
    %p141 = por %p139, %p140
    %p142 = scmp.ne.s32.totalorder %s133, %s134
    %p143 = scmp.eq.s32.totalorder %s17, 0
    %p144 = por %p142, %p143
    %p145 = scmp.ne.s32.totalorder %s133, %s134
    %p146 = scmp.eq.s32.totalorder %s18, 1
    %p147 = por %p145, %p146
    %p149 = scmp.ne.s32.totalorder %s134, %s148
    %p150 = scmp.eq.s32.totalorder %s18, 0
    %p151 = por %p149, %p150
    %s153 = sadd.s32 %s152, 1
    %p156 = scmp.eq.s32.totalorder %s12, 1
    %p157 = scmp.ne.s32.totalorder %s152, %s154
    %p158 = scmp.eq.s32.totalorder %s12, 0
    %p159 = por %p157, %p158
    %p160 = scmp.ne.s32.totalorder %s152, %s154
    %p161 = scmp.eq.s32.totalorder %s17, 1
    %p162 = por %p160, %p161
    %p163 = scmp.ne.s32.totalorder %s154, %s155
    %p164 = scmp.eq.s32.totalorder %s17, 0
    %p165 = por %p163, %p164
    %p166 = scmp.ne.s32.totalorder %s154, %s155
    %p167 = scmp.eq.s32.totalorder %s18, 1
    %p168 = por %p166, %p167
    %p170 = scmp.ne.s32.totalorder %s155, %s169
    %p171 = scmp.eq.s32.totalorder %s18, 0
    %p172 = por %p170, %p171
    %s173 = ssub.s32 %s19, %s31
    %p174 = scmp.eq.s32.totalorder %s173, 0
    %s176 = sadd.s32 %s175, 1
    %s177 = scalar_select %p174, %s175, %s176
    %p180 = pneg %p174
    %p181 = scmp.eq.s32.totalorder %s12, 1
    %p182 = por %p180, %p181
    %p183 = scmp.ne.s32.totalorder %s175, %s178
    %p184 = scmp.eq.s32.totalorder %s12, 0
    %p185 = por %p183, %p184
    %p186 = scmp.ne.s32.totalorder %s175, %s178
    %p187 = scmp.eq.s32.totalorder %s17, 1
    %p188 = por %p186, %p187
    %p189 = scmp.ne.s32.totalorder %s178, %s179
    %p190 = scmp.eq.s32.totalorder %s17, 0
    %p191 = por %p189, %p190
    %p192 = scmp.ne.s32.totalorder %s178, %s179
    %p193 = scmp.eq.s32.totalorder %s18, 1
    %p194 = por %p192, %p193
    %p196 = scmp.ne.s32.totalorder %s179, %s195
    %p197 = scmp.eq.s32.totalorder %s18, 0
    %p198 = por %p196, %p197
    %p199 = scmp.le.s32.totalorder 1, %s12
    %p200 = scmp.lt.s32.totalorder %s12, 3
    %p201 = pnand %p199, %p200
    %p202 = pneg %p201
    // Predicated region
    $region9: #{message_passing.4} parent=5 // pred_check
      _
    $region10: #{message_passing.4} parent=5 // pred_check_branch
      %204 = sbr.rel (%p201) target = $region12
    $region11: #{message_passing.4} parent=5 // pred_region
      %s205 = ssub.s32 %s12, 1
      // Predicated region
      $region13: #{message_passing.4} parent=11 // pred_check
        %p206 = pneg %p50
      $region14: #{message_passing.4} parent=11 // pred_check_branch
        %208 = sbr.rel (%p206) target = $region16
      $region15: #{message_passing.4} parent=11 // pred_region
        %p209 = scmp.lt.s32.totalorder %s22, 0
        %s210 = scalar_select %p209, %s22, 0
        %s211 = scalar_lea.vmem %s0, %s210
      $region16: #{message_passing.4} parent=11 // pred_fallthru
        _
      // Predicated region
      $region17: #{message_passing.4} parent=11 // pred_check
        %p212 = pneg %p76
      $region18: #{message_passing.4} parent=11 // pred_check_branch
        %214 = sbr.rel (%p212) target = $region20
      $region19: #{message_passing.4} parent=11 // pred_region
        %s215 = smul.u32 16, %s22
        %p216 = scmp.lt.s32.totalorder %s215, 15
        %s217 = scalar_select %p216, %s215, 15
        %s218 = smul.addr %s217, 8
        %s219 = scalar_lea.vmem %s1, %s218
        %s220 = smul.u32 16, %s22
      $region20: #{message_passing.4} parent=11 // pred_fallthru
        _
      // Predicated region
      $region21: #{message_passing.4} parent=11 // pred_check
        %p221 = pneg %p123
      $region22: #{message_passing.4} parent=11 // pred_check_branch
        %223 = sbr.rel (%p221) target = $region24
      $region23: #{message_passing.4} parent=11 // pred_region
        _
      $region24: #{message_passing.4} parent=11 // pred_fallthru
        _
      // Predicated region
      $region25: #{message_passing.4} parent=11 // pred_check
        %p224 = pneg %p144
      $region26: #{message_passing.4} parent=11 // pred_check_branch
        %226 = sbr.rel (%p224) target = $region28
      $region27: #{message_passing.4} parent=11 // pred_region
        _
      $region28: #{message_passing.4} parent=11 // pred_fallthru
        _
      // Predicated region
      $region29: #{message_passing.4} parent=11 // pred_check
        %p227 = pneg %p165
      $region30: #{message_passing.4} parent=11 // pred_check_branch
        %229 = sbr.rel (%p227) target = $region32
      $region31: #{message_passing.4} parent=11 // pred_region
        _
      $region32: #{message_passing.4} parent=11 // pred_fallthru
        _
    $region12: #{message_passing.4} parent=5 // pred_fallthru
      _
    %p230 = scmp.lt.s32.totalorder %s12, 2
    // Predicated region
    $region33: #{message_passing.4} parent=5 // pred_check
      %p231 = pneg %p230
    $region34: #{message_passing.4} parent=5 // pred_check_branch
      %233 = sbr.rel (%p231) target = $region36
    $region35: #{message_passing.4} parent=5 // pred_region
      // Predicated region
      $region37: #{message_passing.4} parent=35 // pred_check
        %p234 = pneg %p96
      $region38: #{message_passing.4} parent=35 // pred_check_branch
        %236 = sbr.rel (%p234) target = $region40
      $region39: #{message_passing.4} parent=35 // pred_region
        %s237 = smul.u32 8, %s19
        %p238 = scmp.lt.s32.totalorder %s237, 15
        %s239 = scalar_select %p238, %s237, 15
        %s240 = smul.addr %s239, 8
        %s241 = scalar_lea.vmem %s2, %s240
        %s242 = smul.u32 8, %s19
      $region40: #{message_passing.4} parent=35 // pred_fallthru
        _
    $region36: #{message_passing.4} parent=5 // pred_fallthru
      _
    %p243 = scmp.le.s32.totalorder 1, %s12
    %p244 = scmp.lt.s32.totalorder %s12, 3
    %p245 = pnand %p243, %p244
    %p246 = pneg %p245
    // Predicated region
    $region41: #{message_passing.4} parent=5 // pred_check
      _
    $region42: #{message_passing.4} parent=5 // pred_check_branch
      %248 = sbr.rel (%p245) target = $region44
    $region43: #{message_passing.4} parent=5 // pred_region
      %s249 = ssub.s32 %s12, 1
      %p250 = scmp.lt.s32.totalorder %s22, 0
      %s251 = scalar_select %p250, %s22, 0
      %s252 = scalar_lea.vmem %s0, %s251
      %p253 = pneg %p50
      %p254 = pneg %p47
      %s255 = smul.u32 16, %s22
      %p256 = scmp.lt.s32.totalorder %s255, 15
      %s257 = scalar_select %p256, %s255, 15
      %s258 = smul.addr %s257, 8
      %s259 = scalar_lea.vmem %s1, %s258
      %p260 = pneg %p76
      %p261 = pneg %p73
      %s262 = smul.u32 8, %s21
      %p263 = scmp.lt.s32.totalorder %s262, 15
      %s264 = scalar_select %p263, %s262, 15
      %s265 = smul.addr %s264, 8
      %s266 = scalar_lea.vmem %s2, %s265
      %p267 = pneg %p102
      %p268 = pneg %p99
      %p269 = pneg %p123
      %p270 = pneg %p120
      %p271 = pneg %p144
      %p272 = pneg %p141
      %p273 = pneg %p165
      %p274 = pneg %p162
      %p275 = pneg %p191
      %p276 = pneg %p188
      %s277 = smul.u32 8, %s21
      %p278 = scmp.lt.s32.totalorder %s277, 15
      %s279 = scalar_select %p278, %s277, 15
      %s280 = smul.addr %s279, 8
      %s281 = scalar_lea.vmem %s6, %s280
      %p282 = scmp.lt.s32.totalorder %s22, 0
      %s283 = scalar_select %p282, %s22, 0
      %s284 = scalar_lea.vmem %s0, %s283
      %s285 = smul.u32 16, %s22
      %p286 = scmp.lt.s32.totalorder %s285, 15
      %s287 = scalar_select %p286, %s285, 15
      %s288 = smul.addr %s287, 8
      %s289 = scalar_lea.vmem %s1, %s288
      %s290 = smul.u32 16, %s22
      %s291 = smul.u32 8, %s21
      %p292 = scmp.lt.s32.totalorder %s291, 15
      %s293 = scalar_select %p292, %s291, 15
      %s294 = smul.addr %s293, 8
      %s295 = scalar_lea.vmem %s2, %s294
      %s296 = smul.u32 8, %s21
      %s297 = smul.u32 8, %s21
      %p298 = scmp.lt.s32.totalorder %s297, 15
      %s299 = scalar_select %p298, %s297, 15
      %s300 = smul.addr %s299, 8
      %s301 = scalar_lea.vmem %s6, %s300
      %s302 = smul.u32 8, %s21
      %p303 = scmp.eq.s32.totalorder %s22, 0
      // Predicated region
      $region45: #{message_passing.4} parent=43 // pred_check
        %p304 = pneg %p303
      $region46: #{message_passing.4} parent=43 // pred_check_branch
        %306 = sbr.rel (%p304) target = $region48
      $region47: #{message_passing.4} parent=43 // pred_region
        %vm307 = vcmask 130048
        %308 = vst.msk [vmem:[#allocation2] sm:$0xff] %vm307, 0.0
        %309 = vst.msk [vmem:[#allocation2 + $0x8] sm:$0xff] %vm307, 0.0
        %310 = vst.msk [vmem:[#allocation2 + $0x10] sm:$0xff] %vm307, 0.0
        %311 = vst.msk [vmem:[#allocation2 + $0x18] sm:$0xff] %vm307, 0.0
        %312 = vst.msk [vmem:[#allocation2 + $0x20] sm:$0xff] %vm307, 0.0
        %313 = vst.msk [vmem:[#allocation2 + $0x28] sm:$0xff] %vm307, 0.0
        %314 = vst.msk [vmem:[#allocation2 + $0x30] sm:$0xff] %vm307, 0.0
        %315 = vst.msk [vmem:[#allocation2 + $0x38] sm:$0xff] %vm307, 0.0
        %vm316 = vcmask 7168
        %317 = vst.msk [vmem:[#allocation3] sm:$0xff] %vm316, 0.0
        %318 = vst.msk [vmem:[#allocation3 + $0x8] sm:$0xff] %vm316, 0.0
        %319 = vst.msk [vmem:[#allocation3 + $0x10] sm:$0xff] %vm316, 0.0
        %320 = vst.msk [vmem:[#allocation3 + $0x18] sm:$0xff] %vm316, 0.0
        %321 = vst.msk [vmem:[#allocation3 + $0x20] sm:$0xff] %vm316, 0.0
        %322 = vst.msk [vmem:[#allocation3 + $0x28] sm:$0xff] %vm316, 0.0
        %323 = vst.msk [vmem:[#allocation3 + $0x30] sm:$0xff] %vm316, 0.0
        %324 = vst.msk [vmem:[#allocation3 + $0x38] sm:$0xff] %vm316, 0.0
      $region48: #{message_passing.4} parent=43 // pred_fallthru
        _
      %v325 = vld [vmem:[%s284] sm:$0x1]
      %s326 = smul.u32 %s21, 64
      %v327 = vstv %s326
      %v328 = vsub.s32 %v325, %v327
      %v329 = vlaneseq
      %v330 = vshrl.u32 %v329, 7
      %v331 = vadd.s32 %v330, 8
      %v332 = vadd.s32 %v330, 16
      %v333 = vadd.s32 %v330, 24
      %v334 = vadd.s32 %v330, 32
      %v335 = vadd.s32 %v330, 40
      %v336 = vadd.s32 %v330, 48
      %v337 = vadd.s32 %v330, 56
      %v338 = vperm.slane %v328, 0
      %vm339 = vcmp.eq.s32.totalorder %v330, %v338
      %vm340 = vcmp.eq.s32.totalorder %v331, %v338
      %vm341 = vcmp.eq.s32.totalorder %v332, %v338
      %vm342 = vcmp.eq.s32.totalorder %v333, %v338
      %vm343 = vcmp.eq.s32.totalorder %v334, %v338
      %vm344 = vcmp.eq.s32.totalorder %v335, %v338
      %vm345 = vcmp.eq.s32.totalorder %v336, %v338
      %vm346 = vcmp.eq.s32.totalorder %v337, %v338
      %v347 = vsel %vm339, 1, 0
      %v348 = vsel %vm340, 1, 0
      %v349 = vsel %vm341, 1, 0
      %v350 = vsel %vm342, 1, 0
      %v351 = vsel %vm343, 1, 0
      %v352 = vsel %vm344, 1, 0
      %v353 = vsel %vm345, 1, 0
      %v354 = vsel %vm346, 1, 0
      %v355 = vcvt.s32.f32 %v347
      %v356 = vcvt.s32.f32 %v348
      %v357 = vcvt.s32.f32 %v349
      %v358 = vcvt.s32.f32 %v350
      %v359 = vcvt.s32.f32 %v351
      %v360 = vcvt.s32.f32 %v352
      %v361 = vcvt.s32.f32 %v353
      %v362 = vcvt.s32.f32 %v354
      %v363 = vld [vmem:[#allocation2] sm:$0xff]
      %v364 = vld [vmem:[#allocation2 + $0x8] sm:$0xff]
      %v365 = vld [vmem:[#allocation2 + $0x10] sm:$0xff]
      %v366 = vld [vmem:[#allocation2 + $0x18] sm:$0xff]
      %v367 = vld [vmem:[#allocation2 + $0x20] sm:$0xff]
      %v368 = vld [vmem:[#allocation2 + $0x28] sm:$0xff]
      %v369 = vld [vmem:[#allocation2 + $0x30] sm:$0xff]
      %v370 = vld [vmem:[#allocation2 + $0x38] sm:$0xff]
      %v371 = vld [vmem:[%s289] sm:$0xff]
      %v372 = vld [vmem:[%s289 + $0x8] sm:$0xff]
      %v373 = vld [vmem:[%s289 + $0x10] sm:$0xff]
      %v374 = vld [vmem:[%s289 + $0x18] sm:$0xff]
      %v375 = vld [vmem:[%s289 + $0x20] sm:$0xff]
      %v376 = vld [vmem:[%s289 + $0x28] sm:$0xff]
      %v377 = vld [vmem:[%s289 + $0x30] sm:$0xff]
      %v378 = vld [vmem:[%s289 + $0x38] sm:$0xff]
      %v379 = vld [vmem:[%s289 + $0x40] sm:$0xff]
      %v380 = vld [vmem:[%s289 + $0x48] sm:$0xff]
      %v381 = vld [vmem:[%s289 + $0x50] sm:$0xff]
      %v382 = vld [vmem:[%s289 + $0x58] sm:$0xff]
      %v383 = vld [vmem:[%s289 + $0x60] sm:$0xff]
      %v384 = vld [vmem:[%s289 + $0x68] sm:$0xff]
      %v385 = vld [vmem:[%s289 + $0x70] sm:$0xff]
      %v386 = vld [vmem:[%s289 + $0x78] sm:$0xff]
      %387 = vmatpush.msra.mxu0 %v386
      %388 = vmatpush.msra.mxu0 %v385
      %389 = vmatpush.msra.mxu0 %v384
      %390 = vmatpush.msra.mxu0 %v383
      %391 = vmatpush.msra.mxu0 %v382
      %392 = vmatpush.msra.mxu0 %v381
      %393 = vmatpush.msra.mxu0 %v380
      %394 = vmatpush.msra.mxu0 %v379
      %395 = vmatpush.msra.mxu0 %v378
      %396 = vmatpush.msra.mxu0 %v377
      %397 = vmatpush.msra.mxu0 %v376
      %398 = vmatpush.msra.mxu0 %v375
      %399 = vmatpush.msra.mxu0 %v374
      %400 = vmatpush.msra.mxu0 %v373
      %401 = vmatpush.msra.mxu0 %v372
      %402 = vmatpush.msra.mxu0 %v371
      %403 = vmatmul.f32.gmra.mxu0 %v355
      %v404 = vpop.f32.mrf.mxu0
      %v405 = vadd.f32 0.0, %v404
      %406 = vmatmul.f32.gmra.mxu0 %v356
      %v407 = vpop.f32.mrf.mxu0
      %v408 = vadd.f32 0.0, %v407
      %409 = vmatmul.f32.gmra.mxu0 %v357
      %v410 = vpop.f32.mrf.mxu0
      %v411 = vadd.f32 0.0, %v410
      %412 = vmatmul.f32.gmra.mxu0 %v358
      %v413 = vpop.f32.mrf.mxu0
      %v414 = vadd.f32 0.0, %v413
      %415 = vmatmul.f32.gmra.mxu0 %v359
      %v416 = vpop.f32.mrf.mxu0
      %v417 = vadd.f32 0.0, %v416
      %418 = vmatmul.f32.gmra.mxu0 %v360
      %v419 = vpop.f32.mrf.mxu0
      %v420 = vadd.f32 0.0, %v419
      %421 = vmatmul.f32.gmra.mxu0 %v361
      %v422 = vpop.f32.mrf.mxu0
      %v423 = vadd.f32 0.0, %v422
      %424 = vmatmul.f32.gmra.mxu0 %v362
      %v425 = vpop.f32.mrf.mxu0
      %v426 = vadd.f32 0.0, %v425
      %427 = vdwg.mxu0
      %v428 = vadd.f32 %v363, %v405
      %v429 = vadd.f32 %v364, %v408
      %v430 = vadd.f32 %v365, %v411
      %v431 = vadd.f32 %v366, %v414
      %v432 = vadd.f32 %v367, %v417
      %v433 = vadd.f32 %v368, %v420
      %v434 = vadd.f32 %v369, %v423
      %v435 = vadd.f32 %v370, %v426
      %vm436 = vcmask 130048
      %437 = vst.msk [vmem:[#allocation2] sm:$0xff] %vm436, %v428
      %438 = vst.msk [vmem:[#allocation2 + $0x8] sm:$0xff] %vm436, %v429
      %439 = vst.msk [vmem:[#allocation2 + $0x10] sm:$0xff] %vm436, %v430
      %440 = vst.msk [vmem:[#allocation2 + $0x18] sm:$0xff] %vm436, %v431
      %441 = vst.msk [vmem:[#allocation2 + $0x20] sm:$0xff] %vm436, %v432
      %442 = vst.msk [vmem:[#allocation2 + $0x28] sm:$0xff] %vm436, %v433
      %443 = vst.msk [vmem:[#allocation2 + $0x30] sm:$0xff] %vm436, %v434
      %444 = vst.msk [vmem:[#allocation2 + $0x38] sm:$0xff] %vm436, %v435
      %v445 = vld [vmem:[#allocation3] sm:$0xff]
      %v446 = vld [vmem:[#allocation3 + $0x8] sm:$0xff]
      %v447 = vld [vmem:[#allocation3 + $0x10] sm:$0xff]
      %v448 = vld [vmem:[#allocation3 + $0x18] sm:$0xff]
      %v449 = vld [vmem:[#allocation3 + $0x20] sm:$0xff]
      %v450 = vld [vmem:[#allocation3 + $0x28] sm:$0xff]
      %v451 = vld [vmem:[#allocation3 + $0x30] sm:$0xff]
      %v452 = vld [vmem:[#allocation3 + $0x38] sm:$0xff]
      %453 = vadd.xlane.f32.xlu0 %v355
      %v454 = vpop.xlane.xlu0 %453
      %455 = vadd.xlane.f32.xlu0 %v356
      %v456 = vpop.xlane.xlu0 %455
      %457 = vadd.xlane.f32.xlu0 %v357
      %v458 = vpop.xlane.xlu0 %457
      %459 = vadd.xlane.f32.xlu0 %v358
      %v460 = vpop.xlane.xlu0 %459
      %461 = vadd.xlane.f32.xlu0 %v359
      %v462 = vpop.xlane.xlu0 %461
      %463 = vadd.xlane.f32.xlu0 %v360
      %v464 = vpop.xlane.xlu0 %463
      %465 = vadd.xlane.f32.xlu0 %v361
      %v466 = vpop.xlane.xlu0 %465
      %467 = vadd.xlane.f32.xlu0 %v362
      %v468 = vpop.xlane.xlu0 %467
      %v469 = vadd.f32 %v445, %v454
      %v470 = vadd.f32 %v446, %v456
      %v471 = vadd.f32 %v447, %v458
      %v472 = vadd.f32 %v448, %v460
      %v473 = vadd.f32 %v449, %v462
      %v474 = vadd.f32 %v450, %v464
      %v475 = vadd.f32 %v451, %v466
      %v476 = vadd.f32 %v452, %v468
      %vm477 = vcmask 7168
      %478 = vst.msk [vmem:[#allocation3] sm:$0xff] %vm477, %v469
      %479 = vst.msk [vmem:[#allocation3 + $0x8] sm:$0xff] %vm477, %v470
      %480 = vst.msk [vmem:[#allocation3 + $0x10] sm:$0xff] %vm477, %v471
      %481 = vst.msk [vmem:[#allocation3 + $0x18] sm:$0xff] %vm477, %v472
      %482 = vst.msk [vmem:[#allocation3 + $0x20] sm:$0xff] %vm477, %v473
      %483 = vst.msk [vmem:[#allocation3 + $0x28] sm:$0xff] %vm477, %v474
      %484 = vst.msk [vmem:[#allocation3 + $0x30] sm:$0xff] %vm477, %v475
      %485 = vst.msk [vmem:[#allocation3 + $0x38] sm:$0xff] %vm477, %v476
      // Predicated region
      $region49: #{message_passing.4} parent=43 // pred_check
        %p486 = pneg %p303
      $region50: #{message_passing.4} parent=43 // pred_check_branch
        %488 = sbr.rel (%p486) target = $region52
      $region51: #{message_passing.4} parent=43 // pred_region
        %v489 = vld [vmem:[#allocation2] sm:$0xff]
        %v490 = vld [vmem:[#allocation2 + $0x8] sm:$0xff]
        %v491 = vld [vmem:[#allocation2 + $0x10] sm:$0xff]
        %v492 = vld [vmem:[#allocation2 + $0x18] sm:$0xff]
        %v493 = vld [vmem:[#allocation2 + $0x20] sm:$0xff]
        %v494 = vld [vmem:[#allocation2 + $0x28] sm:$0xff]
        %v495 = vld [vmem:[#allocation2 + $0x30] sm:$0xff]
        %v496 = vld [vmem:[#allocation2 + $0x38] sm:$0xff]
        %v497 = vld [vmem:[#allocation3] sm:$0xff]
        %v498 = vld [vmem:[#allocation3 + $0x8] sm:$0xff]
        %v499 = vld [vmem:[#allocation3 + $0x10] sm:$0xff]
        %v500 = vld [vmem:[#allocation3 + $0x18] sm:$0xff]
        %v501 = vld [vmem:[#allocation3 + $0x20] sm:$0xff]
        %v502 = vld [vmem:[#allocation3 + $0x28] sm:$0xff]
        %v503 = vld [vmem:[#allocation3 + $0x30] sm:$0xff]
        %v504 = vld [vmem:[#allocation3 + $0x38] sm:$0xff]
        %v505 = vmax.f32 %v497, 1.0
        %v506 = vmax.f32 %v498, 1.0
        %v507 = vmax.f32 %v499, 1.0
        %v508 = vmax.f32 %v500, 1.0
        %v509 = vmax.f32 %v501, 1.0
        %v510 = vmax.f32 %v502, 1.0
        %v511 = vmax.f32 %v503, 1.0
        %v512 = vmax.f32 %v504, 1.0
        %514 = vset.pattern.permute.xlu0 0
        %515 = vperm.xlu0 %514, %v505
        %v516 = vpop.permute.xlu0 %515
        %519 = vset.pattern.permute.xlu0 0
        %520 = vperm.xlu0 %519, %v506
        %v521 = vpop.permute.xlu0 %520
        %524 = vset.pattern.permute.xlu0 0
        %525 = vperm.xlu0 %524, %v507
        %v526 = vpop.permute.xlu0 %525
        %529 = vset.pattern.permute.xlu0 0
        %530 = vperm.xlu0 %529, %v508
        %v531 = vpop.permute.xlu0 %530
        %534 = vset.pattern.permute.xlu0 0
        %535 = vperm.xlu0 %534, %v509
        %v536 = vpop.permute.xlu0 %535
        %539 = vset.pattern.permute.xlu0 0
        %540 = vperm.xlu0 %539, %v510
        %v541 = vpop.permute.xlu0 %540
        %544 = vset.pattern.permute.xlu0 0
        %545 = vperm.xlu0 %544, %v511
        %v546 = vpop.permute.xlu0 %545
        %549 = vset.pattern.permute.xlu0 0
        %550 = vperm.xlu0 %549, %v512
        %v551 = vpop.permute.xlu0 %550
        %v553 = vrcp.pop %v516
        %v554 = vmul.f32 %v516, %v553
        %v555 = vsub.f32 1.0, %v554
        %v556 = vmul.f32 %v553, %v555
        %v557 = vadd.f32 %v553, %v556
        %vm558 = vweird.f32 %v516
        %vm559 = vweird.f32 %v553
        %vm560 = vmor %vm558, %vm559
        %v561 = vsel %vm560, %v553, %v557
        %v562 = vand.u32 2147483647, %v516
        %vm563 = vcmp.eq.f32.partialorder %v562, 8.507059e+37
        %v564 = vand.u32 %v516, 2147483648
        %v565 = vor.u32 1.1754944e-38, %v564
        %v566 = vsel %vm563, %v565, %v561
        %v567 = vmul.f32 %v489, %v566
        %v568 = vrcp.pop %v521
        %v569 = vmul.f32 %v521, %v568
        %v570 = vsub.f32 1.0, %v569
        %v571 = vmul.f32 %v568, %v570
        %v572 = vadd.f32 %v568, %v571
        %vm573 = vweird.f32 %v521
        %vm574 = vweird.f32 %v568
        %vm575 = vmor %vm573, %vm574
        %v576 = vsel %vm575, %v568, %v572
        %v577 = vand.u32 2147483647, %v521
        %vm578 = vcmp.eq.f32.partialorder %v577, 8.507059e+37
        %v579 = vand.u32 %v521, 2147483648
        %v580 = vor.u32 1.1754944e-38, %v579
        %v581 = vsel %vm578, %v580, %v576
        %v582 = vmul.f32 %v490, %v581
        %v583 = vrcp.pop %v526
        %v584 = vmul.f32 %v526, %v583
        %v585 = vsub.f32 1.0, %v584
        %v586 = vmul.f32 %v583, %v585
        %v587 = vadd.f32 %v583, %v586
        %vm588 = vweird.f32 %v526
        %vm589 = vweird.f32 %v583
        %vm590 = vmor %vm588, %vm589
        %v591 = vsel %vm590, %v583, %v587
        %v592 = vand.u32 2147483647, %v526
        %vm593 = vcmp.eq.f32.partialorder %v592, 8.507059e+37
        %v594 = vand.u32 %v526, 2147483648
        %v595 = vor.u32 1.1754944e-38, %v594
        %v596 = vsel %vm593, %v595, %v591
        %v597 = vmul.f32 %v491, %v596
        %v598 = vrcp.pop %v531
        %v599 = vmul.f32 %v531, %v598
        %v600 = vsub.f32 1.0, %v599
        %v601 = vmul.f32 %v598, %v600
        %v602 = vadd.f32 %v598, %v601
        %vm603 = vweird.f32 %v531
        %vm604 = vweird.f32 %v598
        %vm605 = vmor %vm603, %vm604
        %v606 = vsel %vm605, %v598, %v602
        %v607 = vand.u32 2147483647, %v531
        %vm608 = vcmp.eq.f32.partialorder %v607, 8.507059e+37
        %v609 = vand.u32 %v531, 2147483648
        %v610 = vor.u32 1.1754944e-38, %v609
        %v611 = vsel %vm608, %v610, %v606
        %v612 = vmul.f32 %v492, %v611
        %v613 = vrcp.pop %v536
        %v614 = vmul.f32 %v536, %v613
        %v615 = vsub.f32 1.0, %v614
        %v616 = vmul.f32 %v613, %v615
        %v617 = vadd.f32 %v613, %v616
        %vm618 = vweird.f32 %v536
        %vm619 = vweird.f32 %v613
        %vm620 = vmor %vm618, %vm619
        %v621 = vsel %vm620, %v613, %v617
        %v622 = vand.u32 2147483647, %v536
        %vm623 = vcmp.eq.f32.partialorder %v622, 8.507059e+37
        %v624 = vand.u32 %v536, 2147483648
        %v625 = vor.u32 1.1754944e-38, %v624
        %v626 = vsel %vm623, %v625, %v621
        %v627 = vmul.f32 %v493, %v626
        %v628 = vrcp.pop %v541
        %v629 = vmul.f32 %v541, %v628
        %v630 = vsub.f32 1.0, %v629
        %v631 = vmul.f32 %v628, %v630
        %v632 = vadd.f32 %v628, %v631
        %vm633 = vweird.f32 %v541
        %vm634 = vweird.f32 %v628
        %vm635 = vmor %vm633, %vm634
        %v636 = vsel %vm635, %v628, %v632
        %v637 = vand.u32 2147483647, %v541
        %vm638 = vcmp.eq.f32.partialorder %v637, 8.507059e+37
        %v639 = vand.u32 %v541, 2147483648
        %v640 = vor.u32 1.1754944e-38, %v639
        %v641 = vsel %vm638, %v640, %v636
        %v642 = vmul.f32 %v494, %v641
        %v643 = vrcp.pop %v546
        %v644 = vmul.f32 %v546, %v643
        %v645 = vsub.f32 1.0, %v644
        %v646 = vmul.f32 %v643, %v645
        %v647 = vadd.f32 %v643, %v646
        %vm648 = vweird.f32 %v546
        %vm649 = vweird.f32 %v643
        %vm650 = vmor %vm648, %vm649
        %v651 = vsel %vm650, %v643, %v647
        %v652 = vand.u32 2147483647, %v546
        %vm653 = vcmp.eq.f32.partialorder %v652, 8.507059e+37
        %v654 = vand.u32 %v546, 2147483648
        %v655 = vor.u32 1.1754944e-38, %v654
        %v656 = vsel %vm653, %v655, %v651
        %v657 = vmul.f32 %v495, %v656
        %v658 = vrcp.pop %v551
        %v659 = vmul.f32 %v551, %v658
        %v660 = vsub.f32 1.0, %v659
        %v661 = vmul.f32 %v658, %v660
        %v662 = vadd.f32 %v658, %v661
        %vm663 = vweird.f32 %v551
        %vm664 = vweird.f32 %v658
        %vm665 = vmor %vm663, %vm664
        %v666 = vsel %vm665, %v658, %v662
        %v667 = vand.u32 2147483647, %v551
        %vm668 = vcmp.eq.f32.partialorder %v667, 8.507059e+37
        %v669 = vand.u32 %v551, 2147483648
        %v670 = vor.u32 1.1754944e-38, %v669
        %v671 = vsel %vm668, %v670, %v666
        %v672 = vmul.f32 %v496, %v671
        %v673 = vld [vmem:[%s3] sm:$0xff]
        %v674 = vld [vmem:[%s3 + $0x8] sm:$0xff]
        %v675 = vld [vmem:[%s295] sm:$0xff]
        %v676 = vld [vmem:[%s295 + $0x8] sm:$0xff]
        %v677 = vld [vmem:[%s295 + $0x10] sm:$0xff]
        %v678 = vld [vmem:[%s295 + $0x18] sm:$0xff]
        %v679 = vld [vmem:[%s295 + $0x20] sm:$0xff]
        %v680 = vld [vmem:[%s295 + $0x28] sm:$0xff]
        %v681 = vld [vmem:[%s295 + $0x30] sm:$0xff]
        %v682 = vld [vmem:[%s295 + $0x38] sm:$0xff]
        %v683 = vld [vmem:[%s4] sm:$0xff]
        %v684 = vld [vmem:[%s4 + $0x8] sm:$0xff]
        %v686 = vsel %vm436, %v675, 0
        %v689 = vsel %vm436, %v676, 0
        %v692 = vsel %vm436, %v677, 0
        %v695 = vsel %vm436, %v678, 0
        %v698 = vsel %vm436, %v679, 0
        %v701 = vsel %vm436, %v680, 0
        %v704 = vsel %vm436, %v681, 0
        %v707 = vsel %vm436, %v682, 0
        %709 = vmatpush.msra.mxu0 0.0
        %710 = vmatpush.msra.mxu0 0.0
        %711 = vmatpush.msra.mxu0 0.0
        %712 = vmatpush.msra.mxu0 0.0
        %713 = vmatpush.msra.mxu0 0.0
        %714 = vmatpush.msra.mxu0 0.0
        %715 = vmatpush.msra.mxu0 0.0
        %716 = vmatpush.msra.mxu0 0.0
        %717 = vmatpush.msra.mxu0 0.0
        %718 = vmatpush.msra.mxu0 0.0
        %719 = vmatpush.msra.mxu0 0.0
        %720 = vmatpush.msra.mxu0 0.0
        %721 = vmatpush.msra.mxu0 0.0
        %722 = vmatpush.msra.mxu0 0.0
        %723 = vmatpush.msra.mxu0 %v684
        %724 = vmatpush.msra.mxu0 %v683
        %725 = vmatmul.f32.gmra.mxu0 %v686
        %v726 = vpop.f32.mrf.mxu0
        %v727 = vadd.f32 0.0, %v726
        %728 = vmatmul.f32.gmra.mxu0 %v689
        %v729 = vpop.f32.mrf.mxu0
        %v730 = vadd.f32 0.0, %v729
        %731 = vmatmul.f32.gmra.mxu0 %v692
        %v732 = vpop.f32.mrf.mxu0
        %v733 = vadd.f32 0.0, %v732
        %734 = vmatmul.f32.gmra.mxu0 %v695
        %v735 = vpop.f32.mrf.mxu0
        %v736 = vadd.f32 0.0, %v735
        %737 = vmatmul.f32.gmra.mxu0 %v698
        %v738 = vpop.f32.mrf.mxu0
        %v739 = vadd.f32 0.0, %v738
        %740 = vmatmul.f32.gmra.mxu0 %v701
        %v741 = vpop.f32.mrf.mxu0
        %v742 = vadd.f32 0.0, %v741
        %743 = vmatmul.f32.gmra.mxu0 %v704
        %v744 = vpop.f32.mrf.mxu0
        %v745 = vadd.f32 0.0, %v744
        %746 = vmatmul.f32.gmra.mxu0 %v707
        %v747 = vpop.f32.mrf.mxu0
        %v748 = vadd.f32 0.0, %v747
        %749 = vdwg.mxu0
        %v751 = vsel %vm436, %v567, 0
        %v754 = vsel %vm436, %v582, 0
        %v757 = vsel %vm436, %v597, 0
        %v760 = vsel %vm436, %v612, 0
        %v763 = vsel %vm436, %v627, 0
        %v766 = vsel %vm436, %v642, 0
        %v769 = vsel %vm436, %v657, 0
        %v772 = vsel %vm436, %v672, 0
        %774 = vmatpush.msra.mxu0 0.0
        %775 = vmatpush.msra.mxu0 0.0
        %776 = vmatpush.msra.mxu0 0.0
        %777 = vmatpush.msra.mxu0 0.0
        %778 = vmatpush.msra.mxu0 0.0
        %779 = vmatpush.msra.mxu0 0.0
        %780 = vmatpush.msra.mxu0 0.0
        %781 = vmatpush.msra.mxu0 0.0
        %782 = vmatpush.msra.mxu0 0.0
        %783 = vmatpush.msra.mxu0 0.0
        %784 = vmatpush.msra.mxu0 0.0
        %785 = vmatpush.msra.mxu0 0.0
        %786 = vmatpush.msra.mxu0 0.0
        %787 = vmatpush.msra.mxu0 0.0
        %788 = vmatpush.msra.mxu0 %v674
        %789 = vmatpush.msra.mxu0 %v673
        %790 = vmatmul.f32.gmra.mxu0 %v751
        %v791 = vpop.f32.mrf.mxu0
        %v792 = vadd.f32 %v727, %v791
        %793 = vmatmul.f32.gmra.mxu0 %v754
        %v794 = vpop.f32.mrf.mxu0
        %v795 = vadd.f32 %v730, %v794
        %796 = vmatmul.f32.gmra.mxu0 %v757
        %v797 = vpop.f32.mrf.mxu0
        %v798 = vadd.f32 %v733, %v797
        %799 = vmatmul.f32.gmra.mxu0 %v760
        %v800 = vpop.f32.mrf.mxu0
        %v801 = vadd.f32 %v736, %v800
        %802 = vmatmul.f32.gmra.mxu0 %v763
        %v803 = vpop.f32.mrf.mxu0
        %v804 = vadd.f32 %v739, %v803
        %805 = vmatmul.f32.gmra.mxu0 %v766
        %v806 = vpop.f32.mrf.mxu0
        %v807 = vadd.f32 %v742, %v806
        %808 = vmatmul.f32.gmra.mxu0 %v769
        %v809 = vpop.f32.mrf.mxu0
        %v810 = vadd.f32 %v745, %v809
        %811 = vmatmul.f32.gmra.mxu0 %v772
        %v812 = vpop.f32.mrf.mxu0
        %v813 = vadd.f32 %v748, %v812
        %814 = vdwg.mxu0
        %v815 = vld [vmem:[%s5] sm:$0x1]
        %v817 = vperm.slane %v815, 0
        %v819 = vadd.f32 %v792, %v817
        %v820 = vadd.f32 %v795, %v817
        %v821 = vadd.f32 %v798, %v817
        %v822 = vadd.f32 %v801, %v817
        %v823 = vadd.f32 %v804, %v817
        %v824 = vadd.f32 %v807, %v817
        %v825 = vadd.f32 %v810, %v817
        %v826 = vadd.f32 %v813, %v817
        %v827 = vmax.f32 %v819, 0.0
        %v828 = vmax.f32 %v820, 0.0
        %v829 = vmax.f32 %v821, 0.0
        %v830 = vmax.f32 %v822, 0.0
        %v831 = vmax.f32 %v823, 0.0
        %v832 = vmax.f32 %v824, 0.0
        %v833 = vmax.f32 %v825, 0.0
        %v834 = vmax.f32 %v826, 0.0
        %835 = vst.msk [vmem:[%s301] sm:$0xff] %vm436, %v827
        %836 = vst.msk [vmem:[%s301 + $0x8] sm:$0xff] %vm436, %v828
        %837 = vst.msk [vmem:[%s301 + $0x10] sm:$0xff] %vm436, %v829
        %838 = vst.msk [vmem:[%s301 + $0x18] sm:$0xff] %vm436, %v830
        %839 = vst.msk [vmem:[%s301 + $0x20] sm:$0xff] %vm436, %v831
        %840 = vst.msk [vmem:[%s301 + $0x28] sm:$0xff] %vm436, %v832
        %841 = vst.msk [vmem:[%s301 + $0x30] sm:$0xff] %vm436, %v833
        %842 = vst.msk [vmem:[%s301 + $0x38] sm:$0xff] %vm436, %v834
      $region52: #{message_passing.4} parent=43 // pred_fallthru
        _
      %s843 = smul.u32 8, %s21
      %p844 = scmp.lt.s32.totalorder %s843, 15
      %s845 = scalar_select %p844, %s843, 15
      %s846 = smul.addr %s845, 8
      %s847 = scalar_lea.vmem %s6, %s846
      // Predicated region
      $region53: #{message_passing.4} parent=43 // pred_check
        %p848 = pneg %p188
      $region54: #{message_passing.4} parent=43 // pred_check_branch
        %850 = sbr.rel (%p848) target = $region56
      $region55: #{message_passing.4} parent=43 // pred_region
        %s851 = smul.u32 8, %s21
      $region56: #{message_passing.4} parent=43 // pred_fallthru
        _
    $region44: #{message_passing.4} parent=5 // pred_fallthru
      _
    %p852 = scmp.le.s32.totalorder 2, %s12
    // Predicated region
    $region57: #{message_passing.4} parent=5 // pred_check
      %p853 = pneg %p852
    $region58: #{message_passing.4} parent=5 // pred_check_branch
      %855 = sbr.rel (%p853) target = $region60
    $region59: #{message_passing.4} parent=5 // pred_region
      %s856 = ssub.s32 %s12, 2
      // Predicated region
      $region61: #{message_passing.4} parent=59 // pred_check
        %p857 = pneg %p194
      $region62: #{message_passing.4} parent=59 // pred_check_branch
        %859 = sbr.rel (%p857) target = $region64
      $region63: #{message_passing.4} parent=59 // pred_region
        %s860 = smul.u32 8, %s23
        %p861 = scmp.lt.s32.totalorder %s860, 15
        %s862 = scalar_select %p861, %s860, 15
        %s863 = smul.addr %s862, 8
        %s864 = scalar_lea.vmem %s6, %s863
      $region64: #{message_passing.4} parent=59 // pred_fallthru
        _
    $region60: #{message_passing.4} parent=5 // pred_fallthru
      _
  $region6: #{message_passing.4} parent=0 // loop_footer
    %s16 = sadd.s32 1, %s12
  $region7: #{message_passing.4} parent=0 // loop_footer_branch
    %11 = sbr.rel target = $region3
  $region8: #{message_passing.4} parent=0 // loop_exit
    _

// kernel: message_passing.5
$region0: #{message_passing.5}
  #allocation0 [shape = 'u32[]', space=smem, size = 0x4, offset = 0x4, fixed_abs, tag = 'smem constant byte address 0x4 - core index']
  #allocation1 [shape = 'u32[72,128]{1,0:T(1,128)}', space=vmem, size = 0x9000, scoped, tag = 'internal scratch']
  #allocation2 [shape = 'f32[2,16]{1,0:T(2,128)}', space=vmem, size = 0x400, scoped, tag = 'scratch operand']
  #allocation3 [shape = 'f32[2,1]{1,0:T(2,128)}', space=vmem, size = 0x400, scoped, tag = 'scratch operand']
  #allocation4 [shape = 'f32[2,16]{1,0:T(2,128)}', space=vmem, size = 0x400, scoped, tag = 'scratch operand']
  #allocation5 [shape = 'f32[2,1]{1,0:T(2,128)}', space=vmem, size = 0x400, scoped, tag = 'scratch operand']
  %s0 = inlined_call_operand.vmem [shape: s32[1,128], index: 0, kind: input, shape index: {}]
  %s1 = inlined_call_operand.vmem [shape: f32[128,16], index: 1, kind: input, shape index: {}]
  %s2 = inlined_call_operand.vmem [shape: s32[1,128], index: 2, kind: input, shape index: {}]
  %s3 = inlined_call_operand.vmem [shape: f32[128,16], index: 3, kind: input, shape index: {}]
  %s4 = inlined_call_operand.vmem [shape: f32[2,8], index: 4, kind: input, shape index: {}]
  %s5 = inlined_call_operand.vmem [shape: f32[16,16], index: 5, kind: input, shape index: {}]
  %s6 = inlined_call_operand.vmem [shape: f32[16,16], index: 6, kind: input, shape index: {}]
  %s7 = inlined_call_operand.vmem [shape: f32[8,16], index: 7, kind: input, shape index: {}]
  %s8 = inlined_call_operand.vmem [shape: f32[1,16], index: 8, kind: input, shape index: {}]
  %s9 = inlined_call_operand.hbm [shape: f32[2,16], index: 9, kind: output, shape index: {}]
  %s10 = sld [smem:[#allocation0]]
  $region58: #{message_passing.5} parent=0
    _
  %s12 = ssub.s32 1, %s10
  %s13 = scalar_select 0, %s12, %s10
  $region1: #{message_passing.5} parent=0
    #allocation6 [shape = 'u8[1024]{0}', space=vmem, size = 0x400, scoped, tag = 'output window, operand 0, single buffered']
    #allocation7 [shape = 's32[1]{0}', space=sflag, size = 0x4, scoped, tag = 'scoped memory for message_passing.5']
    %14 = vsyncpa [#allocation7], 0
    // Predicated region
    $region2: #{message_passing.5} parent=1 // pred_check
      _
    $region3: #{message_passing.5} parent=1 // pred_check_branch
      %16 = sbr.rel (0) target = $region5
    $region4: #{message_passing.5} parent=1 // pred_region
      _
    $region5: #{message_passing.5} parent=1 // pred_fallthru
      _
    // Predicated region
    $region6: #{message_passing.5} parent=1 // pred_check
      _
    $region7: #{message_passing.5} parent=1 // pred_check_branch
      %18 = sbr.rel (0) target = $region9
    $region8: #{message_passing.5} parent=1 // pred_region
      _
    $region9: #{message_passing.5} parent=1 // pred_fallthru
      _
    // Predicated region
    $region10: #{message_passing.5} parent=1 // pred_check
      _
    $region11: #{message_passing.5} parent=1 // pred_check_branch
      %20 = sbr.rel (0) target = $region13
    $region12: #{message_passing.5} parent=1 // pred_region
      _
    $region13: #{message_passing.5} parent=1 // pred_fallthru
      _
    // Predicated region
    $region14: #{message_passing.5} parent=1 // pred_check
      _
    $region15: #{message_passing.5} parent=1 // pred_check_branch
      %22 = sbr.rel (0) target = $region17
    $region16: #{message_passing.5} parent=1 // pred_region
      _
    $region17: #{message_passing.5} parent=1 // pred_fallthru
      _
    // Predicated region
    $region18: #{message_passing.5} parent=1 // pred_check
      _
    $region19: #{message_passing.5} parent=1 // pred_check_branch
      %24 = sbr.rel (0) target = $region21
    $region20: #{message_passing.5} parent=1 // pred_region
      _
    $region21: #{message_passing.5} parent=1 // pred_fallthru
      _
    // Predicated region
    $region22: #{message_passing.5} parent=1 // pred_check
      _
    $region23: #{message_passing.5} parent=1 // pred_check_branch
      %26 = sbr.rel (0) target = $region25
    $region24: #{message_passing.5} parent=1 // pred_region
      _
    $region25: #{message_passing.5} parent=1 // pred_fallthru
      _
    // Predicated region
    $region26: #{message_passing.5} parent=1 // pred_check
      _
    $region27: #{message_passing.5} parent=1 // pred_check_branch
      %28 = sbr.rel (0) target = $region29
    $region28: #{message_passing.5} parent=1 // pred_region
      _
    $region29: #{message_passing.5} parent=1 // pred_fallthru
      _
    // Predicated region
    $region30: #{message_passing.5} parent=1 // pred_check
      _
    $region31: #{message_passing.5} parent=1 // pred_check_branch
      %30 = sbr.rel (0) target = $region33
    $region32: #{message_passing.5} parent=1 // pred_region
      _
    $region33: #{message_passing.5} parent=1 // pred_fallthru
      _
    // Predicated region
    $region34: #{message_passing.5} parent=1 // pred_check
      _
    $region35: #{message_passing.5} parent=1 // pred_check_branch
      %32 = sbr.rel (0) target = $region37
    $region36: #{message_passing.5} parent=1 // pred_region
      _
    $region37: #{message_passing.5} parent=1 // pred_fallthru
      _
    %p33 = scmp.eq.s32.totalorder 0, 0
    // Predicated region
    $region38: #{message_passing.5} parent=1 // pred_check
      %p34 = pneg %p33
    $region39: #{message_passing.5} parent=1 // pred_check_branch
      %36 = sbr.rel (%p34) target = $region41
    $region40: #{message_passing.5} parent=1 // pred_region
      %vm37 = vcmask 123904
      %38 = vst.msk [vmem:[#allocation2] sm:$0x3] %vm37, 0.0
      %vm39 = vcmask 1024
      %40 = vst.msk [vmem:[#allocation3] sm:$0x3] %vm39, 0.0
      %41 = vst.msk [vmem:[#allocation4] sm:$0x3] %vm37, 0.0
      %42 = vst.msk [vmem:[#allocation5] sm:$0x3] %vm39, 0.0
    $region41: #{message_passing.5} parent=1 // pred_fallthru
      _
    %p43 = scmp.lt.s32.totalorder 0, 1
    // Predicated region
    $region42: #{message_passing.5} parent=1 // pred_check
      %p44 = pneg %p43
    $region43: #{message_passing.5} parent=1 // pred_check_branch
      %46 = sbr.rel (%p44) target = $region45
    $region44: #{message_passing.5} parent=1 // pred_region
      %v47 = vld [vmem:[%s0] sm:$0x1]
      %v48 = vlaneseq
      %v49 = vshrl.u32 %v48, 7
      %v50 = vperm.slane %v47, 0
      %vm51 = vcmp.eq.s32.totalorder %v49, %v50
      %v52 = vsel %vm51, 1, 0
      %v53 = vcvt.s32.f32 %v52
      %v54 = vld [vmem:[#allocation2] sm:$0x3]
      %v55 = vld [vmem:[%s1] sm:$0xff]
      %v56 = vld [vmem:[%s1 + $0x8] sm:$0xff]
      %v57 = vld [vmem:[%s1 + $0x10] sm:$0xff]
      %v58 = vld [vmem:[%s1 + $0x18] sm:$0xff]
      %v59 = vld [vmem:[%s1 + $0x20] sm:$0xff]
      %v60 = vld [vmem:[%s1 + $0x28] sm:$0xff]
      %v61 = vld [vmem:[%s1 + $0x30] sm:$0xff]
      %v62 = vld [vmem:[%s1 + $0x38] sm:$0xff]
      %v63 = vld [vmem:[%s1 + $0x40] sm:$0xff]
      %v64 = vld [vmem:[%s1 + $0x48] sm:$0xff]
      %v65 = vld [vmem:[%s1 + $0x50] sm:$0xff]
      %v66 = vld [vmem:[%s1 + $0x58] sm:$0xff]
      %v67 = vld [vmem:[%s1 + $0x60] sm:$0xff]
      %v68 = vld [vmem:[%s1 + $0x68] sm:$0xff]
      %v69 = vld [vmem:[%s1 + $0x70] sm:$0xff]
      %v70 = vld [vmem:[%s1 + $0x78] sm:$0xff]
      %71 = vmatpush.msra.mxu0 %v70
      %72 = vmatpush.msra.mxu0 %v69
      %73 = vmatpush.msra.mxu0 %v68
      %74 = vmatpush.msra.mxu0 %v67
      %75 = vmatpush.msra.mxu0 %v66
      %76 = vmatpush.msra.mxu0 %v65
      %77 = vmatpush.msra.mxu0 %v64
      %78 = vmatpush.msra.mxu0 %v63
      %79 = vmatpush.msra.mxu0 %v62
      %80 = vmatpush.msra.mxu0 %v61
      %81 = vmatpush.msra.mxu0 %v60
      %82 = vmatpush.msra.mxu0 %v59
      %83 = vmatpush.msra.mxu0 %v58
      %84 = vmatpush.msra.mxu0 %v57
      %85 = vmatpush.msra.mxu0 %v56
      %86 = vmatpush.msra.mxu0 %v55
      %87 = vmatmul.f32.gmra.mxu0 %v53
      %v88 = vpop.f32.mrf.mxu0
      %v89 = vadd.f32 0.0, %v88
      %90 = vdwg.mxu0
      %v91 = vadd.f32 %v54, %v89
      %vm92 = vcmask 123904
      %93 = vst.msk [vmem:[#allocation2] sm:$0x3] %vm92, %v91
      %v94 = vld [vmem:[#allocation3] sm:$0x3]
      %vm95 = vcmask 1041408
      %v96 = vsel %vm95, %v53, 0.0
      %97 = vadd.xlane.f32.xlu0 %v96
      %v98 = vpop.xlane.xlu0 %97
      %v99 = vadd.f32 %v94, %v98
      %vm100 = vcmask 1024
      %101 = vst.msk [vmem:[#allocation3] sm:$0x3] %vm100, %v99
      %v102 = vld [vmem:[%s2] sm:$0x1]
      %v103 = vperm.slane %v102, 0
      %vm104 = vcmp.eq.s32.totalorder %v49, %v103
      %v105 = vsel %vm104, 1, 0
      %v106 = vcvt.s32.f32 %v105
      %v107 = vld [vmem:[#allocation4] sm:$0x3]
      %v108 = vld [vmem:[%s3] sm:$0xff]
      %v109 = vld [vmem:[%s3 + $0x8] sm:$0xff]
      %v110 = vld [vmem:[%s3 + $0x10] sm:$0xff]
      %v111 = vld [vmem:[%s3 + $0x18] sm:$0xff]
      %v112 = vld [vmem:[%s3 + $0x20] sm:$0xff]
      %v113 = vld [vmem:[%s3 + $0x28] sm:$0xff]
      %v114 = vld [vmem:[%s3 + $0x30] sm:$0xff]
      %v115 = vld [vmem:[%s3 + $0x38] sm:$0xff]
      %v116 = vld [vmem:[%s3 + $0x40] sm:$0xff]
      %v117 = vld [vmem:[%s3 + $0x48] sm:$0xff]
      %v118 = vld [vmem:[%s3 + $0x50] sm:$0xff]
      %v119 = vld [vmem:[%s3 + $0x58] sm:$0xff]
      %v120 = vld [vmem:[%s3 + $0x60] sm:$0xff]
      %v121 = vld [vmem:[%s3 + $0x68] sm:$0xff]
      %v122 = vld [vmem:[%s3 + $0x70] sm:$0xff]
      %v123 = vld [vmem:[%s3 + $0x78] sm:$0xff]
      %124 = vmatpush.msra.mxu0 %v123
      %125 = vmatpush.msra.mxu0 %v122
      %126 = vmatpush.msra.mxu0 %v121
      %127 = vmatpush.msra.mxu0 %v120
      %128 = vmatpush.msra.mxu0 %v119
      %129 = vmatpush.msra.mxu0 %v118
      %130 = vmatpush.msra.mxu0 %v117
      %131 = vmatpush.msra.mxu0 %v116
      %132 = vmatpush.msra.mxu0 %v115
      %133 = vmatpush.msra.mxu0 %v114
      %134 = vmatpush.msra.mxu0 %v113
      %135 = vmatpush.msra.mxu0 %v112
      %136 = vmatpush.msra.mxu0 %v111
      %137 = vmatpush.msra.mxu0 %v110
      %138 = vmatpush.msra.mxu0 %v109
      %139 = vmatpush.msra.mxu0 %v108
      %140 = vmatmul.f32.gmra.mxu0 %v106
      %v141 = vpop.f32.mrf.mxu0
      %v142 = vadd.f32 0.0, %v141
      %143 = vdwg.mxu0
      %v144 = vadd.f32 %v107, %v142
      %145 = vst.msk [vmem:[#allocation4] sm:$0x3] %vm92, %v144
      %v146 = vld [vmem:[#allocation5] sm:$0x3]
      %v147 = vsel %vm95, %v106, 0.0
      %148 = vadd.xlane.f32.xlu0 %v147
      %v149 = vpop.xlane.xlu0 %148
      %v150 = vadd.f32 %v146, %v149
      %151 = vst.msk [vmem:[#allocation5] sm:$0x3] %vm100, %v150
    $region45: #{message_passing.5} parent=1 // pred_fallthru
      _
    // Predicated region
    $region46: #{message_passing.5} parent=1 // pred_check
      %p152 = pneg %p33
    $region47: #{message_passing.5} parent=1 // pred_check_branch
      %154 = sbr.rel (%p152) target = $region49
    $region48: #{message_passing.5} parent=1 // pred_region
      %v155 = vld [vmem:[#allocation2] sm:$0x3]
      %v156 = vld [vmem:[#allocation3] sm:$0x3]
      %v157 = vmax.f32 %v156, 1.0
      %159 = vset.pattern.permute.xlu0 0
      %160 = vperm.xlu0 %159, %v157
      %v161 = vpop.permute.xlu0 %160
      %v163 = vrcp.pop %v161
      %v164 = vmul.f32 %v161, %v163
      %v165 = vsub.f32 1.0, %v164
      %v166 = vmul.f32 %v163, %v165
      %v167 = vadd.f32 %v163, %v166
      %vm168 = vweird.f32 %v161
      %vm169 = vweird.f32 %v163
      %vm170 = vmor %vm168, %vm169
      %v171 = vsel %vm170, %v163, %v167
      %v172 = vand.u32 2147483647, %v161
      %vm173 = vcmp.eq.f32.partialorder %v172, 8.507059e+37
      %v174 = vand.u32 %v161, 2147483648
      %v175 = vor.u32 1.1754944e-38, %v174
      %v176 = vsel %vm173, %v175, %v171
      %v177 = vmul.f32 %v155, %v176
      %v178 = vld [vmem:[#allocation4] sm:$0x3]
      %v179 = vld [vmem:[#allocation5] sm:$0x3]
      %v180 = vmax.f32 %v179, 1.0
      %182 = vset.pattern.permute.xlu0 0
      %183 = vperm.xlu0 %182, %v180
      %v184 = vpop.permute.xlu0 %183
      %v186 = vrcp.pop %v184
      %v187 = vmul.f32 %v184, %v186
      %v188 = vsub.f32 1.0, %v187
      %v189 = vmul.f32 %v186, %v188
      %v190 = vadd.f32 %v186, %v189
      %vm191 = vweird.f32 %v184
      %vm192 = vweird.f32 %v186
      %vm193 = vmor %vm191, %vm192
      %v194 = vsel %vm193, %v186, %v190
      %v195 = vand.u32 2147483647, %v184
      %vm196 = vcmp.eq.f32.partialorder %v195, 8.507059e+37
      %v197 = vand.u32 %v184, 2147483648
      %v198 = vor.u32 1.1754944e-38, %v197
      %v199 = vsel %vm196, %v198, %v194
      %v200 = vmul.f32 %v178, %v199
      %v201 = vld [vmem:[%s5] sm:$0xff]
      %v202 = vld [vmem:[%s5 + $0x8] sm:$0xff]
      %v203 = vld [vmem:[%s6] sm:$0xff]
      %v204 = vld [vmem:[%s6 + $0x8] sm:$0xff]
      %vm205 = vcmask 130048
      %v207 = vsel %vm205, %v200, 0
      %209 = vmatpush.msra.mxu0 0.0
      %210 = vmatpush.msra.mxu0 0.0
      %211 = vmatpush.msra.mxu0 0.0
      %212 = vmatpush.msra.mxu0 0.0
      %213 = vmatpush.msra.mxu0 0.0
      %214 = vmatpush.msra.mxu0 0.0
      %215 = vmatpush.msra.mxu0 0.0
      %216 = vmatpush.msra.mxu0 0.0
      %217 = vmatpush.msra.mxu0 0.0
      %218 = vmatpush.msra.mxu0 0.0
      %219 = vmatpush.msra.mxu0 0.0
      %220 = vmatpush.msra.mxu0 0.0
      %221 = vmatpush.msra.mxu0 0.0
      %222 = vmatpush.msra.mxu0 0.0
      %223 = vmatpush.msra.mxu0 %v204
      %224 = vmatpush.msra.mxu0 %v203
      %225 = vmatmul.f32.gmra.mxu0 %v207
      %v226 = vpop.f32.mrf.mxu0
      %v227 = vadd.f32 0.0, %v226
      %228 = vdwg.mxu0
      %v230 = vsel %vm205, %v177, 0
      %232 = vmatpush.msra.mxu0 0.0
      %233 = vmatpush.msra.mxu0 0.0
      %234 = vmatpush.msra.mxu0 0.0
      %235 = vmatpush.msra.mxu0 0.0
      %236 = vmatpush.msra.mxu0 0.0
      %237 = vmatpush.msra.mxu0 0.0
      %238 = vmatpush.msra.mxu0 0.0
      %239 = vmatpush.msra.mxu0 0.0
      %240 = vmatpush.msra.mxu0 0.0
      %241 = vmatpush.msra.mxu0 0.0
      %242 = vmatpush.msra.mxu0 0.0
      %243 = vmatpush.msra.mxu0 0.0
      %244 = vmatpush.msra.mxu0 0.0
      %245 = vmatpush.msra.mxu0 0.0
      %246 = vmatpush.msra.mxu0 %v202
      %247 = vmatpush.msra.mxu0 %v201
      %248 = vmatmul.f32.gmra.mxu0 %v230
      %v249 = vpop.f32.mrf.mxu0
      %v250 = vadd.f32 %v227, %v249
      %251 = vdwg.mxu0
      %v252 = vld [vmem:[%s4] sm:$0x3]
      %v253 = vld [vmem:[%s7] sm:$0xff]
      %vm254 = vcmask 64512
      %v256 = vsel %vm254, %v252, 0
      %258 = vmatpush.msra.mxu0 0.0
      %259 = vmatpush.msra.mxu0 0.0
      %260 = vmatpush.msra.mxu0 0.0
      %261 = vmatpush.msra.mxu0 0.0
      %262 = vmatpush.msra.mxu0 0.0
      %263 = vmatpush.msra.mxu0 0.0
      %264 = vmatpush.msra.mxu0 0.0
      %265 = vmatpush.msra.mxu0 0.0
      %266 = vmatpush.msra.mxu0 0.0
      %267 = vmatpush.msra.mxu0 0.0
      %268 = vmatpush.msra.mxu0 0.0
      %269 = vmatpush.msra.mxu0 0.0
      %270 = vmatpush.msra.mxu0 0.0
      %271 = vmatpush.msra.mxu0 0.0
      %272 = vmatpush.msra.mxu0 0.0
      %273 = vmatpush.msra.mxu0 %v253
      %274 = vmatmul.f32.gmra.mxu0 %v256
      %v275 = vpop.f32.mrf.mxu0
      %v276 = vadd.f32 0.0, %v275
      %277 = vdwg.mxu0
      %v278 = vadd.f32 %v250, %v276
      %v279 = vld [vmem:[%s8] sm:$0x1]
      %v281 = vperm.slane %v279, 0
      %v283 = vadd.f32 %v278, %v281
      %v284 = vmax.f32 %v283, 0.0
      %vm285 = vcmask 123904
      %286 = vst.msk [vmem:[#allocation6] sm:$0x3] %vm285, %v284
    $region49: #{message_passing.5} parent=1 // pred_fallthru
      _
    // Predicated region
    $region50: #{message_passing.5} parent=1 // pred_check
      _
    $region51: #{message_passing.5} parent=1 // pred_check_branch
      %288 = sbr.rel (0) target = $region53
    $region52: #{message_passing.5} parent=1 // pred_region
      %290 = vsyncadd [#allocation7], 0
      %s292 = sshll.u32 [#allocation6], 4
      %s293 = int_to_ptr.vmem [resolvable:$true] %s292
      %s294 = sshll.u32 %s9, 4
      %s295 = int_to_ptr.hbm [resolvable:$true] %s294
      %297 = dma.vmem_to_hbm [thread:$0]  %s293, 32, %s295, [#allocation7]
    $region53: #{message_passing.5} parent=1 // pred_fallthru
      _
    // Predicated region
    $region54: #{message_passing.5} parent=1 // pred_check
      _
    $region55: #{message_passing.5} parent=1 // pred_check_branch
      %299 = sbr.rel (0) target = $region57
    $region56: #{message_passing.5} parent=1 // pred_region
      %301 = dma.done [#allocation7], 32
    $region57: #{message_passing.5} parent=1 // pred_fallthru
      _
    %302 = vsyncpa [#allocation7], 1

</llo_original>
